<compile_context>
chip_gen: v6e
topology: v6e:2x2x1
jax: 0.10.0
libtpu: 0.0.40
codegen_flags: <defaults>
</compile_context>

<pallas_src>
import functools

import jax
import jax.numpy as jnp
from jax.experimental import pallas as pl
from jax.experimental.pallas import tpu as pltpu

LN_EPS = 1e-5


def _layernorm_f32(y, gamma, beta):
    mu = jnp.mean(y, axis=-1, keepdims=True)
    var = jnp.mean((y - mu) ** 2, axis=-1, keepdims=True)
    return (y - mu) * jax.lax.rsqrt(var + LN_EPS) * gamma + beta


def encoder_layer_kernel(
    x_ref,
    wqkv_ref, bqkv_ref,
    wo_ref, bo_ref,
    w1_ref, b1_ref, w2_ref, b2_ref,
    g1_ref, be1_ref, g2_ref, be2_ref,
    out_ref,
    *, num_heads, d_head, seq_len, batch_per_block, ffwd_chunk,
):
    rows, d_model = x_ref.shape                      # rows = batch_per_block * seq_len

    x_f32 = x_ref[...].astype(jnp.float32)
    x_bf = x_f32.astype(jnp.bfloat16)

    # ---- fused Q/K/V projection (bf16 inputs, f32 MXU accumulation) -------------------
    # 1/sqrt(d_head) is already folded into the Q columns of wqkv/bqkv by the wrapper.
    qkv = jnp.dot(x_bf, wqkv_ref[...], preferred_element_type=jnp.float32) + bqkv_ref[...]
    qkv_bf = qkv.astype(jnp.bfloat16)                # single hoisted cast for all heads
    qkv3 = qkv_bf.reshape(batch_per_block, seq_len, 3 * d_model)   # leading-dim split (free)
    q3 = qkv3[:, :, 0:d_model]
    k3 = qkv3[:, :, d_model:2 * d_model]
    v3 = qkv3[:, :, 2 * d_model:3 * d_model]

    # ---- attention, batched over the batch dim; heads folded into the output projection
    proj = jnp.zeros((rows, d_model), jnp.float32)
    for h in range(num_heads):
        lo, hi = h * d_head, (h + 1) * d_head
        qh, kh, vh = q3[:, :, lo:hi], k3[:, :, lo:hi], v3[:, :, lo:hi]

        s = jnp.einsum("bqd,bkd->bqk", qh, kh,
                       preferred_element_type=jnp.float32)           # (bpb, S, S) f32
        p = jnp.exp(s - jnp.max(s, axis=-1, keepdims=True))          # un-normalized probs
        denom = jnp.sum(p, axis=-1, keepdims=True)
        o = jnp.einsum("bqk,bkd->bqd", p.astype(jnp.bfloat16), vh,
                       preferred_element_type=jnp.float32)           # (bpb, S, dh) f32
        # Deferred softmax normalization on the small (S, dh) output (EUP approx recip).
        o = o * pl.reciprocal(denom, approx=True)

        o2 = o.reshape(rows, d_head).astype(jnp.bfloat16)            # leading-dim merge (free)
        # concat(heads) @ Wo  ==  sum_h o_h @ Wo[h*dh:(h+1)*dh, :]  -> no narrow stores.
        proj = proj + jnp.dot(o2, wo_ref[lo:hi, :],
                              preferred_element_type=jnp.float32)

    proj = proj + bo_ref[...]
    y = _layernorm_f32(proj + x_f32, g1_ref[...], be1_ref[...])      # residual + LN1 (f32)

    # ---- feed-forward, chunked over ffwd dim; residual + LN2 --------------------------
    y_bf = y.astype(jnp.bfloat16)
    ffwd_dim = w1_ref.shape[1]
    f = jnp.zeros((rows, d_model), jnp.float32)
    for c0 in range(0, ffwd_dim, ffwd_chunk):
        c1 = min(c0 + ffwd_chunk, ffwd_dim)
        h1 = jnp.dot(y_bf, w1_ref[:, c0:c1],
                     preferred_element_type=jnp.float32) + b1_ref[:, c0:c1]
        h1 = jnp.maximum(h1, 0.0)                                    # ReLU (chunk-exact)
        f = f + jnp.dot(h1.astype(jnp.bfloat16), w2_ref[c0:c1, :],
                        preferred_element_type=jnp.float32)
    f = f + b2_ref[...]

    z = _layernorm_f32(f + y, g2_ref[...], be2_ref[...])
    out_ref[...] = z.astype(out_ref.dtype)


def _num_tensorcores():
    try:
        dev = jax.devices()[0]
        return int(getattr(dev, "num_cores", 1) or 1)
    except Exception:
        return 1


def _choose_batch_per_block(B, S, target_rows, num_tc):
    ideal = max(1, target_rows // max(S, 1))
    if num_tc >= 2 and B >= 2:
        ideal = min(ideal, max(1, B // 2))   # keep >=2 grid points only if a 2nd TC exists
    ideal = max(1, min(ideal, B))
    for cand in range(ideal, 0, -1):
        if B % cand == 0 and ((cand * S) % 8 == 0 or cand == B):
            return cand
    return B


def encoder_layer(x, params, *, num_heads, target_rows=512, ffwd_chunk=1024):
    B, S, D = x.shape
    assert D % num_heads == 0, "d_model must be a multiple of num_heads"
    d_head = D // num_heads

    num_tc = _num_tensorcores()
    bpb = _choose_batch_per_block(B, S, target_rows, num_tc)
    rows = bpb * S
    grid = (B // bpb,)
    assert rows % 8 == 0 or rows == B * S, (
        "rows per block must be a multiple of 8 (f32 sublane) or cover the full array")

    bf16, f32 = jnp.bfloat16, jnp.float32
    scale = 1.0 / (float(d_head) ** 0.5)
    # Fold the attention scale into Q; fuse Q/K/V weights column-wise.
    wqkv = jnp.concatenate(
        [params["wq"] * scale, params["wk"], params["wv"]], axis=1).astype(bf16)
    bqkv = jnp.concatenate(
        [params["bq"] * scale, params["bk"], params["bv"]], axis=1).astype(f32)

    weight_args = [
        wqkv, bqkv,
        params["wo"].astype(bf16), params["bo"].astype(f32),
        params["w1"].astype(bf16), params["b1"].astype(f32),
        params["w2"].astype(bf16), params["b2"].astype(f32),
        params["ln1_g"].astype(f32), params["ln1_b"].astype(f32),
        params["ln2_g"].astype(f32), params["ln2_b"].astype(f32),
    ]

    ffwd_dim = params["w1"].shape[1]
    ffwd_chunk = max(1, min(ffwd_chunk, ffwd_dim))

    def full_spec(arr):
        return pl.BlockSpec(arr.shape, lambda i, _nd=arr.ndim: (0,) * _nd)

    # 2-D row view of the activations: contiguous, lane-dense (rows, D) slabs per grid step.
    x2d = x.reshape(B * S, D)
    row_spec = pl.BlockSpec((rows, D), lambda i: (i, 0))
    in_specs = [row_spec] + [full_spec(w) for w in weight_args]

    # ---- explicit VMEM budget (weights double-buffered, activations, f32 intermediates)
    nbytes = lambda a: a.size * a.dtype.itemsize
    weight_bytes = sum(nbytes(a) for a in weight_args)
    act_io_bytes = rows * D * 4 * 2 * 2              # x + out blocks, double-buffered
    interm_bytes = (
        rows * 3 * D * (4 + 2)                       # fused qkv (f32 + hoisted bf16 copy)
        + bpb * S * S * 4 * 2                        # live per-head logits / probs
        + rows * D * 4 * 4                           # proj / y / f / residual temporaries
        + rows * ffwd_chunk * (4 + 2)                # ffwd chunk (f32 + bf16)
    )
    try:
        info = pltpu.get_tpu_info()
        vmem_cap = int(getattr(info, "vmem_capacity_bytes", 64 << 20))
    except Exception:
        vmem_cap = 64 << 20                          # conservative: v7x per-core VMEM
    budget = int(1.5 * (2 * weight_bytes + act_io_bytes + interm_bytes)) + (4 << 20)
    vmem_limit = min(budget, vmem_cap - (2 << 20))
    vmem_limit = max(vmem_limit, min(32 << 20, vmem_cap - (2 << 20)))

    kernel = functools.partial(
        encoder_layer_kernel,
        num_heads=num_heads, d_head=d_head, seq_len=S,
        batch_per_block=bpb, ffwd_chunk=ffwd_chunk,
    )

    out2d = pl.pallas_call(
        kernel,
        out_shape=jax.ShapeDtypeStruct((B * S, D), x.dtype),
        grid_spec=pltpu.PrefetchScalarGridSpec(
            num_scalar_prefetch=0,
            grid=grid,
            in_specs=in_specs,
            out_specs=row_spec,
        ),
        compiler_params=pltpu.CompilerParams(
            dimension_semantics=("parallel",),
            vmem_limit_bytes=vmem_limit,
        ),
    )(x2d, *weight_args)

    return out2d.reshape(B, S, D)


def init_params(key, d_model, num_heads, ffwd_dim):
    """Deterministic synthetic init. Linear weights stored (in, out); biases as (1, out)."""
    ks = jax.random.split(key, 16)
    s = 0.05

    def w(k, shape):
        return jax.random.normal(k, shape, jnp.float32) * s

    return {
        # per-head Q/K/V weights stacked column-wise -> (D, D), matching torch.cat(dim=-1)
        "wq": w(ks[0], (d_model, d_model)), "bq": w(ks[1], (1, d_model)),
        "wk": w(ks[2], (d_model, d_model)), "bk": w(ks[3], (1, d_model)),
        "wv": w(ks[4], (d_model, d_model)), "bv": w(ks[5], (1, d_model)),
        "wo": w(ks[6], (d_model, d_model)), "bo": w(ks[7], (1, d_model)),
        "w1": w(ks[8], (d_model, ffwd_dim)), "b1": w(ks[9], (1, ffwd_dim)),
        "w2": w(ks[10], (ffwd_dim, d_model)), "b2": w(ks[11], (1, d_model)),
        "ln1_g": jnp.ones((1, d_model), jnp.float32),
        "ln1_b": jnp.zeros((1, d_model), jnp.float32),
        "ln2_g": jnp.ones((1, d_model), jnp.float32),
        "ln2_b": jnp.zeros((1, d_model), jnp.float32),
    }


def encoder_layer_reference(x, params, *, num_heads):
    """Pure-JAX fp32 reference reproducing the PyTorch forward for validation."""
    B, S, D = x.shape
    dh = D // num_heads
    q = x @ params["wq"] + params["bq"]
    k = x @ params["wk"] + params["bk"]
    v = x @ params["wv"] + params["bv"]
    outs = []
    for h in range(num_heads):
        lo, hi = h * dh, (h + 1) * dh
        qh, kh, vh = q[..., lo:hi], k[..., lo:hi], v[..., lo:hi]
        attn = jnp.einsum("bqd,bkd->bqk", qh, kh) / (dh ** 0.5)
        attn = jax.nn.softmax(attn, axis=-1)
        outs.append(jnp.einsum("bqk,bkd->bqd", attn, vh))
    a = jnp.concatenate(outs, axis=-1) @ params["wo"] + params["bo"]

    def ln(y, g, b):
        mu = jnp.mean(y, axis=-1, keepdims=True)
        var = jnp.mean((y - mu) ** 2, axis=-1, keepdims=True)
        return (y - mu) / jnp.sqrt(var + LN_EPS) * g + b

    y = ln(a + x, params["ln1_g"], params["ln1_b"])
    f = jnp.maximum(y @ params["w1"] + params["b1"], 0.0) @ params["w2"] + params["b2"]
    return ln(f + y, params["ln2_g"], params["ln2_b"])


if __name__ == "__main__":
    B, S, D = 2, 8, 32
    NUM_HEADS, FFWD_DIM = 4, 64

    key = jax.random.PRNGKey(0)
    kx, kp = jax.random.split(key)
    x = jax.random.normal(kx, (B, S, D), jnp.float32)
    params = init_params(kp, D, NUM_HEADS, FFWD_DIM)

    out = encoder_layer(x, params, num_heads=NUM_HEADS)
    out = jax.block_until_ready(out)

    ref = encoder_layer_reference(x, params, num_heads=NUM_HEADS)
    assert out.shape == (B, S, D)
    # bf16 matmul inputs + approx reciprocal -> loosened tolerance vs. the fp32 reference.
    assert jnp.allclose(out, ref, rtol=5e-2, atol=5e-2), "mismatch vs. JAX reference"

    print("KERNEL_OK")
</pallas_src>

<mosaic_0001>
module attributes {stable_mosaic.version = 11 : i64} {
  func.func @encoder_layer_kernel(%arg0: i32, %arg1: memref<16x32xf32, #tpu.memory_space<vmem>>, %arg2: memref<32x96xbf16, #tpu.memory_space<vmem>>, %arg3: memref<1x96xf32, #tpu.memory_space<vmem>>, %arg4: memref<32x32xbf16, #tpu.memory_space<vmem>>, %arg5: memref<1x32xf32, #tpu.memory_space<vmem>>, %arg6: memref<32x64xbf16, #tpu.memory_space<vmem>>, %arg7: memref<1x64xf32, #tpu.memory_space<vmem>>, %arg8: memref<64x32xbf16, #tpu.memory_space<vmem>>, %arg9: memref<1x32xf32, #tpu.memory_space<vmem>>, %arg10: memref<1x32xf32, #tpu.memory_space<vmem>>, %arg11: memref<1x32xf32, #tpu.memory_space<vmem>>, %arg12: memref<1x32xf32, #tpu.memory_space<vmem>>, %arg13: memref<1x32xf32, #tpu.memory_space<vmem>>, %arg14: memref<16x32xf32, #tpu.memory_space<vmem>>) attributes {dimension_semantics = [#tpu.dimension_semantics<parallel>], iteration_bounds = array<i64: 1>, scalar_prefetch = 0 : i64, scratch_operands = 0 : i64, tpu.core_type = #tpu.core_type<tc>, window_params = [{transform_indices = @transform_0, window_bounds = array<i64: 16, 32>}, {pipeline_mode = #tpu.pipeline_mode<synchronous>, transform_indices = @transform_1, window_bounds = array<i64: 32, 96>}, {pipeline_mode = #tpu.pipeline_mode<synchronous>, transform_indices = @transform_2, window_bounds = array<i64: 1, 96>}, {pipeline_mode = #tpu.pipeline_mode<synchronous>, transform_indices = @transform_3, window_bounds = array<i64: 32, 32>}, {pipeline_mode = #tpu.pipeline_mode<synchronous>, transform_indices = @transform_4, window_bounds = array<i64: 1, 32>}, {pipeline_mode = #tpu.pipeline_mode<synchronous>, transform_indices = @transform_5, window_bounds = array<i64: 32, 64>}, {pipeline_mode = #tpu.pipeline_mode<synchronous>, transform_indices = @transform_6, window_bounds = array<i64: 1, 64>}, {pipeline_mode = #tpu.pipeline_mode<synchronous>, transform_indices = @transform_7, window_bounds = array<i64: 64, 32>}, {pipeline_mode = #tpu.pipeline_mode<synchronous>, transform_indices = @transform_8, window_bounds = array<i64: 1, 32>}, {pipeline_mode = #tpu.pipeline_mode<synchronous>, transform_indices = @transform_9, window_bounds = array<i64: 1, 32>}, {pipeline_mode = #tpu.pipeline_mode<synchronous>, transform_indices = @transform_10, window_bounds = array<i64: 1, 32>}, {pipeline_mode = #tpu.pipeline_mode<synchronous>, transform_indices = @transform_11, window_bounds = array<i64: 1, 32>}, {pipeline_mode = #tpu.pipeline_mode<synchronous>, transform_indices = @transform_12, window_bounds = array<i64: 1, 32>}, {transform_indices = @transform_13, window_bounds = array<i64: 16, 32>}]} {
    %c0 = arith.constant 0 : index
    %c0_0 = arith.constant 0 : index
    %0 = vector.load %arg1[%c0, %c0_0] : memref<16x32xf32, #tpu.memory_space<vmem>>, vector<16x32xf32>
    %1 = arith.truncf %0 : vector<16x32xf32> to vector<16x32xbf16>
    %c0_1 = arith.constant 0 : index
    %c0_2 = arith.constant 0 : index
    %2 = vector.load %arg2[%c0_1, %c0_2] : memref<32x96xbf16, #tpu.memory_space<vmem>>, vector<32x96xbf16>
    %cst = arith.constant dense<0.000000e+00> : vector<16x96xf32>
    %3 = tpu.matmul %1, %2, %cst {dimension_numbers = #tpu.dot_dimension_numbers<[1], [0], [0], [1], [0, 0, 1, 1], [], []>} : vector<16x32xbf16>, vector<32x96xbf16>, vector<16x96xf32> -> vector<16x96xf32>
    %c0_3 = arith.constant 0 : index
    %c0_4 = arith.constant 0 : index
    %4 = vector.load %arg3[%c0_3, %c0_4] : memref<1x96xf32, #tpu.memory_space<vmem>>, vector<1x96xf32>
    %5 = vector.broadcast %4 : vector<1x96xf32> to vector<16x96xf32>
    %6 = arith.addf %3, %5 : vector<16x96xf32>
    %7 = arith.truncf %6 : vector<16x96xf32> to vector<16x96xbf16>
    %8 = vector.shape_cast %7 : vector<16x96xbf16> to vector<2x8x96xbf16>
    %9 = vector.extract_strided_slice %8 {offsets = [0, 0, 0], sizes = [2, 8, 32], strides = [1, 1, 1]} : vector<2x8x96xbf16> to vector<2x8x32xbf16>
    %10 = vector.extract_strided_slice %8 {offsets = [0, 0, 32], sizes = [2, 8, 32], strides = [1, 1, 1]} : vector<2x8x96xbf16> to vector<2x8x32xbf16>
    %11 = vector.extract_strided_slice %8 {offsets = [0, 0, 64], sizes = [2, 8, 32], strides = [1, 1, 1]} : vector<2x8x96xbf16> to vector<2x8x32xbf16>
    %cst_5 = arith.constant 0.000000e+00 : f32
    %12 = vector.broadcast %cst_5 : f32 to vector<16x32xf32>
    %13 = vector.extract_strided_slice %9 {offsets = [0, 0, 0], sizes = [2, 8, 8], strides = [1, 1, 1]} : vector<2x8x32xbf16> to vector<2x8x8xbf16>
    %14 = vector.extract_strided_slice %10 {offsets = [0, 0, 0], sizes = [2, 8, 8], strides = [1, 1, 1]} : vector<2x8x32xbf16> to vector<2x8x8xbf16>
    %15 = vector.extract_strided_slice %11 {offsets = [0, 0, 0], sizes = [2, 8, 8], strides = [1, 1, 1]} : vector<2x8x32xbf16> to vector<2x8x8xbf16>
    "tpu.trace_start"() <{level = 10 : i32, message = "bqd,bkd->bqk"}> : () -> ()
    %cst_6 = arith.constant dense<0.000000e+00> : vector<2x8x8xf32>
    %16 = tpu.matmul %13, %14, %cst_6 {dimension_numbers = #tpu.dot_dimension_numbers<[2], [2], [1], [1], [0, 0, 0, 1, 1, 1], [0], [0]>} : vector<2x8x8xbf16>, vector<2x8x8xbf16>, vector<2x8x8xf32> -> vector<2x8x8xf32>
    "tpu.trace_stop"() : () -> ()
    %cst_7 = arith.constant dense<0xFF800000> : vector<2x8xf32>
    %17 = vector.multi_reduction <maximumf>, %16, %cst_7 [2] : vector<2x8x8xf32> to vector<2x8xf32>
    %18 = vector.shape_cast %17 : vector<2x8xf32> to vector<2x8x1xf32>
    %19 = vector.broadcast %18 : vector<2x8x1xf32> to vector<2x8x8xf32>
    %20 = arith.subf %16, %19 : vector<2x8x8xf32>
    %21 = math.exp %20 : vector<2x8x8xf32>
    %cst_8 = arith.constant dense<0.000000e+00> : vector<2x8xf32>
    %22 = vector.multi_reduction <add>, %21, %cst_8 [2] : vector<2x8x8xf32> to vector<2x8xf32>
    %23 = vector.shape_cast %22 : vector<2x8xf32> to vector<2x8x1xf32>
    %24 = arith.truncf %21 : vector<2x8x8xf32> to vector<2x8x8xbf16>
    "tpu.trace_start"() <{level = 10 : i32, message = "bqk,bkd->bqd"}> : () -> ()
    %cst_9 = arith.constant dense<0.000000e+00> : vector<2x8x8xf32>
    %25 = tpu.matmul %24, %15, %cst_9 {dimension_numbers = #tpu.dot_dimension_numbers<[2], [1], [1], [2], [0, 0, 0, 1, 1, 2], [0], [0]>} : vector<2x8x8xbf16>, vector<2x8x8xbf16>, vector<2x8x8xf32> -> vector<2x8x8xf32>
    "tpu.trace_stop"() : () -> ()
    %26 = tpu.reciprocal %23 {approx = true} : vector<2x8x1xf32> -> vector<2x8x1xf32>
    %27 = vector.broadcast %26 : vector<2x8x1xf32> to vector<2x8x8xf32>
    %28 = arith.mulf %25, %27 : vector<2x8x8xf32>
    %29 = vector.shape_cast %28 : vector<2x8x8xf32> to vector<16x8xf32>
    %30 = arith.truncf %29 : vector<16x8xf32> to vector<16x8xbf16>
    %c0_10 = arith.constant 0 : index
    %c0_11 = arith.constant 0 : index
    %31 = vector.load %arg4[%c0_10, %c0_11] : memref<32x32xbf16, #tpu.memory_space<vmem>>, vector<8x32xbf16>
    %cst_12 = arith.constant dense<0.000000e+00> : vector<16x32xf32>
    %32 = tpu.matmul %30, %31, %cst_12 {dimension_numbers = #tpu.dot_dimension_numbers<[1], [0], [0], [1], [0, 0, 1, 1], [], []>} : vector<16x8xbf16>, vector<8x32xbf16>, vector<16x32xf32> -> vector<16x32xf32>
    %33 = arith.addf %12, %32 : vector<16x32xf32>
    %34 = vector.extract_strided_slice %9 {offsets = [0, 0, 8], sizes = [2, 8, 8], strides = [1, 1, 1]} : vector<2x8x32xbf16> to vector<2x8x8xbf16>
    %35 = vector.extract_strided_slice %10 {offsets = [0, 0, 8], sizes = [2, 8, 8], strides = [1, 1, 1]} : vector<2x8x32xbf16> to vector<2x8x8xbf16>
    %36 = vector.extract_strided_slice %11 {offsets = [0, 0, 8], sizes = [2, 8, 8], strides = [1, 1, 1]} : vector<2x8x32xbf16> to vector<2x8x8xbf16>
    "tpu.trace_start"() <{level = 10 : i32, message = "bqd,bkd->bqk"}> : () -> ()
    %cst_13 = arith.constant dense<0.000000e+00> : vector<2x8x8xf32>
    %37 = tpu.matmul %34, %35, %cst_13 {dimension_numbers = #tpu.dot_dimension_numbers<[2], [2], [1], [1], [0, 0, 0, 1, 1, 1], [0], [0]>} : vector<2x8x8xbf16>, vector<2x8x8xbf16>, vector<2x8x8xf32> -> vector<2x8x8xf32>
    "tpu.trace_stop"() : () -> ()
    %cst_14 = arith.constant dense<0xFF800000> : vector<2x8xf32>
    %38 = vector.multi_reduction <maximumf>, %37, %cst_14 [2] : vector<2x8x8xf32> to vector<2x8xf32>
    %39 = vector.shape_cast %38 : vector<2x8xf32> to vector<2x8x1xf32>
    %40 = vector.broadcast %39 : vector<2x8x1xf32> to vector<2x8x8xf32>
    %41 = arith.subf %37, %40 : vector<2x8x8xf32>
    %42 = math.exp %41 : vector<2x8x8xf32>
    %cst_15 = arith.constant dense<0.000000e+00> : vector<2x8xf32>
    %43 = vector.multi_reduction <add>, %42, %cst_15 [2] : vector<2x8x8xf32> to vector<2x8xf32>
    %44 = vector.shape_cast %43 : vector<2x8xf32> to vector<2x8x1xf32>
    %45 = arith.truncf %42 : vector<2x8x8xf32> to vector<2x8x8xbf16>
    "tpu.trace_start"() <{level = 10 : i32, message = "bqk,bkd->bqd"}> : () -> ()
    %cst_16 = arith.constant dense<0.000000e+00> : vector<2x8x8xf32>
    %46 = tpu.matmul %45, %36, %cst_16 {dimension_numbers = #tpu.dot_dimension_numbers<[2], [1], [1], [2], [0, 0, 0, 1, 1, 2], [0], [0]>} : vector<2x8x8xbf16>, vector<2x8x8xbf16>, vector<2x8x8xf32> -> vector<2x8x8xf32>
    "tpu.trace_stop"() : () -> ()
    %47 = tpu.reciprocal %44 {approx = true} : vector<2x8x1xf32> -> vector<2x8x1xf32>
    %48 = vector.broadcast %47 : vector<2x8x1xf32> to vector<2x8x8xf32>
    %49 = arith.mulf %46, %48 : vector<2x8x8xf32>
    %50 = vector.shape_cast %49 : vector<2x8x8xf32> to vector<16x8xf32>
    %51 = arith.truncf %50 : vector<16x8xf32> to vector<16x8xbf16>
    %c8 = arith.constant 8 : index
    %c0_17 = arith.constant 0 : index
    %52 = vector.load %arg4[%c8, %c0_17] : memref<32x32xbf16, #tpu.memory_space<vmem>>, vector<8x32xbf16>
    %cst_18 = arith.constant dense<0.000000e+00> : vector<16x32xf32>
    %53 = tpu.matmul %51, %52, %cst_18 {dimension_numbers = #tpu.dot_dimension_numbers<[1], [0], [0], [1], [0, 0, 1, 1], [], []>} : vector<16x8xbf16>, vector<8x32xbf16>, vector<16x32xf32> -> vector<16x32xf32>
    %54 = arith.addf %33, %53 : vector<16x32xf32>
    %55 = vector.extract_strided_slice %9 {offsets = [0, 0, 16], sizes = [2, 8, 8], strides = [1, 1, 1]} : vector<2x8x32xbf16> to vector<2x8x8xbf16>
    %56 = vector.extract_strided_slice %10 {offsets = [0, 0, 16], sizes = [2, 8, 8], strides = [1, 1, 1]} : vector<2x8x32xbf16> to vector<2x8x8xbf16>
    %57 = vector.extract_strided_slice %11 {offsets = [0, 0, 16], sizes = [2, 8, 8], strides = [1, 1, 1]} : vector<2x8x32xbf16> to vector<2x8x8xbf16>
    "tpu.trace_start"() <{level = 10 : i32, message = "bqd,bkd->bqk"}> : () -> ()
    %cst_19 = arith.constant dense<0.000000e+00> : vector<2x8x8xf32>
    %58 = tpu.matmul %55, %56, %cst_19 {dimension_numbers = #tpu.dot_dimension_numbers<[2], [2], [1], [1], [0, 0, 0, 1, 1, 1], [0], [0]>} : vector<2x8x8xbf16>, vector<2x8x8xbf16>, vector<2x8x8xf32> -> vector<2x8x8xf32>
    "tpu.trace_stop"() : () -> ()
    %cst_20 = arith.constant dense<0xFF800000> : vector<2x8xf32>
    %59 = vector.multi_reduction <maximumf>, %58, %cst_20 [2] : vector<2x8x8xf32> to vector<2x8xf32>
    %60 = vector.shape_cast %59 : vector<2x8xf32> to vector<2x8x1xf32>
    %61 = vector.broadcast %60 : vector<2x8x1xf32> to vector<2x8x8xf32>
    %62 = arith.subf %58, %61 : vector<2x8x8xf32>
    %63 = math.exp %62 : vector<2x8x8xf32>
    %cst_21 = arith.constant dense<0.000000e+00> : vector<2x8xf32>
    %64 = vector.multi_reduction <add>, %63, %cst_21 [2] : vector<2x8x8xf32> to vector<2x8xf32>
    %65 = vector.shape_cast %64 : vector<2x8xf32> to vector<2x8x1xf32>
    %66 = arith.truncf %63 : vector<2x8x8xf32> to vector<2x8x8xbf16>
    "tpu.trace_start"() <{level = 10 : i32, message = "bqk,bkd->bqd"}> : () -> ()
    %cst_22 = arith.constant dense<0.000000e+00> : vector<2x8x8xf32>
    %67 = tpu.matmul %66, %57, %cst_22 {dimension_numbers = #tpu.dot_dimension_numbers<[2], [1], [1], [2], [0, 0, 0, 1, 1, 2], [0], [0]>} : vector<2x8x8xbf16>, vector<2x8x8xbf16>, vector<2x8x8xf32> -> vector<2x8x8xf32>
    "tpu.trace_stop"() : () -> ()
    %68 = tpu.reciprocal %65 {approx = true} : vector<2x8x1xf32> -> vector<2x8x1xf32>
    %69 = vector.broadcast %68 : vector<2x8x1xf32> to vector<2x8x8xf32>
    %70 = arith.mulf %67, %69 : vector<2x8x8xf32>
    %71 = vector.shape_cast %70 : vector<2x8x8xf32> to vector<16x8xf32>
    %72 = arith.truncf %71 : vector<16x8xf32> to vector<16x8xbf16>
    %c16 = arith.constant 16 : index
    %c0_23 = arith.constant 0 : index
    %73 = vector.load %arg4[%c16, %c0_23] : memref<32x32xbf16, #tpu.memory_space<vmem>>, vector<8x32xbf16>
    %cst_24 = arith.constant dense<0.000000e+00> : vector<16x32xf32>
    %74 = tpu.matmul %72, %73, %cst_24 {dimension_numbers = #tpu.dot_dimension_numbers<[1], [0], [0], [1], [0, 0, 1, 1], [], []>} : vector<16x8xbf16>, vector<8x32xbf16>, vector<16x32xf32> -> vector<16x32xf32>
    %75 = arith.addf %54, %74 : vector<16x32xf32>
    %76 = vector.extract_strided_slice %9 {offsets = [0, 0, 24], sizes = [2, 8, 8], strides = [1, 1, 1]} : vector<2x8x32xbf16> to vector<2x8x8xbf16>
    %77 = vector.extract_strided_slice %10 {offsets = [0, 0, 24], sizes = [2, 8, 8], strides = [1, 1, 1]} : vector<2x8x32xbf16> to vector<2x8x8xbf16>
    %78 = vector.extract_strided_slice %11 {offsets = [0, 0, 24], sizes = [2, 8, 8], strides = [1, 1, 1]} : vector<2x8x32xbf16> to vector<2x8x8xbf16>
    "tpu.trace_start"() <{level = 10 : i32, message = "bqd,bkd->bqk"}> : () -> ()
    %cst_25 = arith.constant dense<0.000000e+00> : vector<2x8x8xf32>
    %79 = tpu.matmul %76, %77, %cst_25 {dimension_numbers = #tpu.dot_dimension_numbers<[2], [2], [1], [1], [0, 0, 0, 1, 1, 1], [0], [0]>} : vector<2x8x8xbf16>, vector<2x8x8xbf16>, vector<2x8x8xf32> -> vector<2x8x8xf32>
    "tpu.trace_stop"() : () -> ()
    %cst_26 = arith.constant dense<0xFF800000> : vector<2x8xf32>
    %80 = vector.multi_reduction <maximumf>, %79, %cst_26 [2] : vector<2x8x8xf32> to vector<2x8xf32>
    %81 = vector.shape_cast %80 : vector<2x8xf32> to vector<2x8x1xf32>
    %82 = vector.broadcast %81 : vector<2x8x1xf32> to vector<2x8x8xf32>
    %83 = arith.subf %79, %82 : vector<2x8x8xf32>
    %84 = math.exp %83 : vector<2x8x8xf32>
    %cst_27 = arith.constant dense<0.000000e+00> : vector<2x8xf32>
    %85 = vector.multi_reduction <add>, %84, %cst_27 [2] : vector<2x8x8xf32> to vector<2x8xf32>
    %86 = vector.shape_cast %85 : vector<2x8xf32> to vector<2x8x1xf32>
    %87 = arith.truncf %84 : vector<2x8x8xf32> to vector<2x8x8xbf16>
    "tpu.trace_start"() <{level = 10 : i32, message = "bqk,bkd->bqd"}> : () -> ()
    %cst_28 = arith.constant dense<0.000000e+00> : vector<2x8x8xf32>
    %88 = tpu.matmul %87, %78, %cst_28 {dimension_numbers = #tpu.dot_dimension_numbers<[2], [1], [1], [2], [0, 0, 0, 1, 1, 2], [0], [0]>} : vector<2x8x8xbf16>, vector<2x8x8xbf16>, vector<2x8x8xf32> -> vector<2x8x8xf32>
    "tpu.trace_stop"() : () -> ()
    %89 = tpu.reciprocal %86 {approx = true} : vector<2x8x1xf32> -> vector<2x8x1xf32>
    %90 = vector.broadcast %89 : vector<2x8x1xf32> to vector<2x8x8xf32>
    %91 = arith.mulf %88, %90 : vector<2x8x8xf32>
    %92 = vector.shape_cast %91 : vector<2x8x8xf32> to vector<16x8xf32>
    %93 = arith.truncf %92 : vector<16x8xf32> to vector<16x8xbf16>
    %c24 = arith.constant 24 : index
    %c0_29 = arith.constant 0 : index
    %94 = vector.load %arg4[%c24, %c0_29] : memref<32x32xbf16, #tpu.memory_space<vmem>>, vector<8x32xbf16>
    %cst_30 = arith.constant dense<0.000000e+00> : vector<16x32xf32>
    %95 = tpu.matmul %93, %94, %cst_30 {dimension_numbers = #tpu.dot_dimension_numbers<[1], [0], [0], [1], [0, 0, 1, 1], [], []>} : vector<16x8xbf16>, vector<8x32xbf16>, vector<16x32xf32> -> vector<16x32xf32>
    %96 = arith.addf %75, %95 : vector<16x32xf32>
    %c0_31 = arith.constant 0 : index
    %c0_32 = arith.constant 0 : index
    %97 = vector.load %arg5[%c0_31, %c0_32] : memref<1x32xf32, #tpu.memory_space<vmem>>, vector<1x32xf32>
    %98 = vector.broadcast %97 : vector<1x32xf32> to vector<16x32xf32>
    %99 = arith.addf %96, %98 : vector<16x32xf32>
    %100 = arith.addf %99, %0 : vector<16x32xf32>
    %c0_33 = arith.constant 0 : index
    %c0_34 = arith.constant 0 : index
    %101 = vector.load %arg10[%c0_33, %c0_34] : memref<1x32xf32, #tpu.memory_space<vmem>>, vector<1x32xf32>
    %c0_35 = arith.constant 0 : index
    %c0_36 = arith.constant 0 : index
    %102 = vector.load %arg11[%c0_35, %c0_36] : memref<1x32xf32, #tpu.memory_space<vmem>>, vector<1x32xf32>
    %cst_37 = arith.constant dense<0.000000e+00> : vector<16xf32>
    %103 = vector.multi_reduction <add>, %100, %cst_37 [1] : vector<16x32xf32> to vector<16xf32>
    %104 = vector.shape_cast %103 : vector<16xf32> to vector<16x1xf32>
    %cst_38 = arith.constant 3.200000e+01 : f32
    %105 = vector.broadcast %cst_38 : f32 to vector<16x1xf32>
    %106 = arith.divf %104, %105 : vector<16x1xf32>
    %107 = vector.broadcast %106 : vector<16x1xf32> to vector<16x32xf32>
    %108 = arith.subf %100, %107 : vector<16x32xf32>
    %109 = arith.mulf %108, %108 : vector<16x32xf32>
    %cst_39 = arith.constant dense<0.000000e+00> : vector<16xf32>
    %110 = vector.multi_reduction <add>, %109, %cst_39 [1] : vector<16x32xf32> to vector<16xf32>
    %111 = vector.shape_cast %110 : vector<16xf32> to vector<16x1xf32>
    %cst_40 = arith.constant 3.200000e+01 : f32
    %112 = vector.broadcast %cst_40 : f32 to vector<16x1xf32>
    %113 = arith.divf %111, %112 : vector<16x1xf32>
    %114 = vector.broadcast %106 : vector<16x1xf32> to vector<16x32xf32>
    %115 = arith.subf %100, %114 : vector<16x32xf32>
    %cst_41 = arith.constant 9.99999974E-6 : f32
    %116 = vector.broadcast %cst_41 : f32 to vector<16x1xf32>
    %117 = arith.addf %113, %116 : vector<16x1xf32>
    %118 = math.rsqrt %117 : vector<16x1xf32>
    %119 = vector.broadcast %118 : vector<16x1xf32> to vector<16x32xf32>
    %120 = arith.mulf %115, %119 : vector<16x32xf32>
    %121 = vector.broadcast %101 : vector<1x32xf32> to vector<16x32xf32>
    %122 = arith.mulf %120, %121 : vector<16x32xf32>
    %123 = vector.broadcast %102 : vector<1x32xf32> to vector<16x32xf32>
    %124 = arith.addf %122, %123 : vector<16x32xf32>
    %125 = arith.truncf %124 : vector<16x32xf32> to vector<16x32xbf16>
    %cst_42 = arith.constant 0.000000e+00 : f32
    %126 = vector.broadcast %cst_42 : f32 to vector<16x32xf32>
    %c0_43 = arith.constant 0 : index
    %c0_44 = arith.constant 0 : index
    %127 = vector.load %arg6[%c0_43, %c0_44] : memref<32x64xbf16, #tpu.memory_space<vmem>>, vector<32x64xbf16>
    %cst_45 = arith.constant dense<0.000000e+00> : vector<16x64xf32>
    %128 = tpu.matmul %125, %127, %cst_45 {dimension_numbers = #tpu.dot_dimension_numbers<[1], [0], [0], [1], [0, 0, 1, 1], [], []>} : vector<16x32xbf16>, vector<32x64xbf16>, vector<16x64xf32> -> vector<16x64xf32>
    %c0_46 = arith.constant 0 : index
    %c0_47 = arith.constant 0 : index
    %129 = vector.load %arg7[%c0_46, %c0_47] : memref<1x64xf32, #tpu.memory_space<vmem>>, vector<1x64xf32>
    %130 = vector.broadcast %129 : vector<1x64xf32> to vector<16x64xf32>
    %131 = arith.addf %128, %130 : vector<16x64xf32>
    %cst_48 = arith.constant 0.000000e+00 : f32
    %132 = vector.broadcast %cst_48 : f32 to vector<16x64xf32>
    %133 = arith.maximumf %131, %132 : vector<16x64xf32>
    %134 = arith.truncf %133 : vector<16x64xf32> to vector<16x64xbf16>
    %c0_49 = arith.constant 0 : index
    %c0_50 = arith.constant 0 : index
    %135 = vector.load %arg8[%c0_49, %c0_50] : memref<64x32xbf16, #tpu.memory_space<vmem>>, vector<64x32xbf16>
    %cst_51 = arith.constant dense<0.000000e+00> : vector<16x32xf32>
    %136 = tpu.matmul %134, %135, %cst_51 {dimension_numbers = #tpu.dot_dimension_numbers<[1], [0], [0], [1], [0, 0, 1, 1], [], []>} : vector<16x64xbf16>, vector<64x32xbf16>, vector<16x32xf32> -> vector<16x32xf32>
    %137 = arith.addf %126, %136 : vector<16x32xf32>
    %c0_52 = arith.constant 0 : index
    %c0_53 = arith.constant 0 : index
    %138 = vector.load %arg9[%c0_52, %c0_53] : memref<1x32xf32, #tpu.memory_space<vmem>>, vector<1x32xf32>
    %139 = vector.broadcast %138 : vector<1x32xf32> to vector<16x32xf32>
    %140 = arith.addf %137, %139 : vector<16x32xf32>
    %141 = arith.addf %140, %124 : vector<16x32xf32>
    %c0_54 = arith.constant 0 : index
    %c0_55 = arith.constant 0 : index
    %142 = vector.load %arg12[%c0_54, %c0_55] : memref<1x32xf32, #tpu.memory_space<vmem>>, vector<1x32xf32>
    %c0_56 = arith.constant 0 : index
    %c0_57 = arith.constant 0 : index
    %143 = vector.load %arg13[%c0_56, %c0_57] : memref<1x32xf32, #tpu.memory_space<vmem>>, vector<1x32xf32>
    %cst_58 = arith.constant dense<0.000000e+00> : vector<16xf32>
    %144 = vector.multi_reduction <add>, %141, %cst_58 [1] : vector<16x32xf32> to vector<16xf32>
    %145 = vector.shape_cast %144 : vector<16xf32> to vector<16x1xf32>
    %cst_59 = arith.constant 3.200000e+01 : f32
    %146 = vector.broadcast %cst_59 : f32 to vector<16x1xf32>
    %147 = arith.divf %145, %146 : vector<16x1xf32>
    %148 = vector.broadcast %147 : vector<16x1xf32> to vector<16x32xf32>
    %149 = arith.subf %141, %148 : vector<16x32xf32>
    %150 = arith.mulf %149, %149 : vector<16x32xf32>
    %cst_60 = arith.constant dense<0.000000e+00> : vector<16xf32>
    %151 = vector.multi_reduction <add>, %150, %cst_60 [1] : vector<16x32xf32> to vector<16xf32>
    %152 = vector.shape_cast %151 : vector<16xf32> to vector<16x1xf32>
    %cst_61 = arith.constant 3.200000e+01 : f32
    %153 = vector.broadcast %cst_61 : f32 to vector<16x1xf32>
    %154 = arith.divf %152, %153 : vector<16x1xf32>
    %155 = vector.broadcast %147 : vector<16x1xf32> to vector<16x32xf32>
    %156 = arith.subf %141, %155 : vector<16x32xf32>
    %cst_62 = arith.constant 9.99999974E-6 : f32
    %157 = vector.broadcast %cst_62 : f32 to vector<16x1xf32>
    %158 = arith.addf %154, %157 : vector<16x1xf32>
    %159 = math.rsqrt %158 : vector<16x1xf32>
    %160 = vector.broadcast %159 : vector<16x1xf32> to vector<16x32xf32>
    %161 = arith.mulf %156, %160 : vector<16x32xf32>
    %162 = vector.broadcast %142 : vector<1x32xf32> to vector<16x32xf32>
    %163 = arith.mulf %161, %162 : vector<16x32xf32>
    %164 = vector.broadcast %143 : vector<1x32xf32> to vector<16x32xf32>
    %165 = arith.addf %163, %164 : vector<16x32xf32>
    %c0_63 = arith.constant 0 : index
    %c0_64 = arith.constant 0 : index
    %166 = vector.load %arg14[%c0_63, %c0_64] : memref<16x32xf32, #tpu.memory_space<vmem>>, vector<16x32xf32>
    tpu.vector_store %arg14[%c0_63, %c0_64], %165 {strides = array<i32>} : memref<16x32xf32, #tpu.memory_space<vmem>>, vector<16x32xf32>,
    return
  }
  func.func @transform_0(%arg0: i32) -> (i32, i32) {
    %c0_i32 = arith.constant 0 : i32
    %c0_i32_0 = arith.constant 0 : i32
    return %arg0, %c0_i32 : i32, i32
  }
  func.func @transform_1(%arg0: i32) -> (i32, i32) {
    %c0_i32 = arith.constant 0 : i32
    %c0_i32_0 = arith.constant 0 : i32
    %c0_i32_1 = arith.constant 0 : i32
    return %c0_i32, %c0_i32_0 : i32, i32
  }
  func.func @transform_2(%arg0: i32) -> (i32, i32) {
    %c0_i32 = arith.constant 0 : i32
    %c0_i32_0 = arith.constant 0 : i32
    %c0_i32_1 = arith.constant 0 : i32
    return %c0_i32, %c0_i32_0 : i32, i32
  }
  func.func @transform_3(%arg0: i32) -> (i32, i32) {
    %c0_i32 = arith.constant 0 : i32
    %c0_i32_0 = arith.constant 0 : i32
    %c0_i32_1 = arith.constant 0 : i32
    return %c0_i32, %c0_i32_0 : i32, i32
  }
  func.func @transform_4(%arg0: i32) -> (i32, i32) {
    %c0_i32 = arith.constant 0 : i32
    %c0_i32_0 = arith.constant 0 : i32
    %c0_i32_1 = arith.constant 0 : i32
    return %c0_i32, %c0_i32_0 : i32, i32
  }
  func.func @transform_5(%arg0: i32) -> (i32, i32) {
    %c0_i32 = arith.constant 0 : i32
    %c0_i32_0 = arith.constant 0 : i32
    %c0_i32_1 = arith.constant 0 : i32
    return %c0_i32, %c0_i32_0 : i32, i32
  }
  func.func @transform_6(%arg0: i32) -> (i32, i32) {
    %c0_i32 = arith.constant 0 : i32
    %c0_i32_0 = arith.constant 0 : i32
    %c0_i32_1 = arith.constant 0 : i32
    return %c0_i32, %c0_i32_0 : i32, i32
  }
  func.func @transform_7(%arg0: i32) -> (i32, i32) {
    %c0_i32 = arith.constant 0 : i32
    %c0_i32_0 = arith.constant 0 : i32
    %c0_i32_1 = arith.constant 0 : i32
    return %c0_i32, %c0_i32_0 : i32, i32
  }
  func.func @transform_8(%arg0: i32) -> (i32, i32) {
    %c0_i32 = arith.constant 0 : i32
    %c0_i32_0 = arith.constant 0 : i32
    %c0_i32_1 = arith.constant 0 : i32
    return %c0_i32, %c0_i32_0 : i32, i32
  }
  func.func @transform_9(%arg0: i32) -> (i32, i32) {
    %c0_i32 = arith.constant 0 : i32
    %c0_i32_0 = arith.constant 0 : i32
    %c0_i32_1 = arith.constant 0 : i32
    return %c0_i32, %c0_i32_0 : i32, i32
  }
  func.func @transform_10(%arg0: i32) -> (i32, i32) {
    %c0_i32 = arith.constant 0 : i32
    %c0_i32_0 = arith.constant 0 : i32
    %c0_i32_1 = arith.constant 0 : i32
    return %c0_i32, %c0_i32_0 : i32, i32
  }
  func.func @transform_11(%arg0: i32) -> (i32, i32) {
    %c0_i32 = arith.constant 0 : i32
    %c0_i32_0 = arith.constant 0 : i32
    %c0_i32_1 = arith.constant 0 : i32
    return %c0_i32, %c0_i32_0 : i32, i32
  }
  func.func @transform_12(%arg0: i32) -> (i32, i32) {
    %c0_i32 = arith.constant 0 : i32
    %c0_i32_0 = arith.constant 0 : i32
    %c0_i32_1 = arith.constant 0 : i32
    return %c0_i32, %c0_i32_0 : i32, i32
  }
  func.func @transform_13(%arg0: i32) -> (i32, i32) {
    %c0_i32 = arith.constant 0 : i32
    %c0_i32_0 = arith.constant 0 : i32
    return %arg0, %c0_i32 : i32, i32
  }
}

</mosaic_0001>

<llo_original>
// kernel: tpu_custom_call.1
$region0: #{tpu_custom_call.1}
  #allocation0 [shape = 'u32[]', space=smem, size = 0x4, offset = 0x4, fixed_abs, tag = 'smem constant byte address 0x4 - core index']
  #allocation1 [shape = 'u32[144,128]{1,0:T(1,128)}', space=vmem, size = 0x12000, scoped, tag = 'internal scratch']
  %s0 = inlined_call_operand.vmem [shape: f32[16,32], index: 0, kind: input, shape index: {}]
  %s1 = inlined_call_operand.vmem [shape: bf16[32,96], index: 1, kind: input, shape index: {}]
  %s2 = inlined_call_operand.vmem [shape: f32[1,96], index: 2, kind: input, shape index: {}]
  %s3 = inlined_call_operand.vmem [shape: bf16[32,32], index: 3, kind: input, shape index: {}]
  %s4 = inlined_call_operand.vmem [shape: f32[1,32], index: 4, kind: input, shape index: {}]
  %s5 = inlined_call_operand.hbm [shape: bf16[32,64], index: 5, kind: input, shape index: {}]
  %s6 = inlined_call_operand.vmem [shape: f32[1,64], index: 6, kind: input, shape index: {}]
  %s7 = inlined_call_operand.vmem [shape: bf16[64,32], index: 7, kind: input, shape index: {}]
  %s8 = inlined_call_operand.vmem [shape: f32[1,32], index: 8, kind: input, shape index: {}]
  %s9 = inlined_call_operand.vmem [shape: f32[1,32], index: 9, kind: input, shape index: {}]
  %s10 = inlined_call_operand.vmem [shape: f32[1,32], index: 10, kind: input, shape index: {}]
  %s11 = inlined_call_operand.vmem [shape: f32[1,32], index: 11, kind: input, shape index: {}]
  %s12 = inlined_call_operand.vmem [shape: f32[1,32], index: 12, kind: input, shape index: {}]
  %s13 = inlined_call_operand.hbm [shape: f32[16,32], index: 13, kind: output, shape index: {}]
  %s14 = sld [smem:[#allocation0]]
  $region66: #{tpu_custom_call.1} parent=0
    _
  %s16 = ssub.s32 1, %s14
  %s17 = scalar_select 0, %s16, %s14
  $region1: #{tpu_custom_call.1} parent=0
    #allocation2 [shape = 'u8[8192]{0}', space=vmem, size = 0x2000, scoped, tag = 'input window, operand 5, single buffered']
    #allocation3 [shape = 's32[1]{0}', space=sflag, size = 0x4, scoped, tag = 'scoped memory for tpu_custom_call.1']
    #allocation4 [shape = 's32[1]{0}', space=sflag, size = 0x4, scoped, tag = 'scoped memory for tpu_custom_call.1']
    #allocation5 [shape = 'u8[8192]{0}', space=vmem, size = 0x2000, scoped, tag = 'output window, operand 0, single buffered']
    %18 = vsyncpa [#allocation3], 0
    %19 = vsyncpa [#allocation4], 0
    // Predicated region
    $region2: #{tpu_custom_call.1} parent=1 // pred_check
      _
    $region3: #{tpu_custom_call.1} parent=1 // pred_check_branch
      %21 = sbr.rel (0) target = $region5
    $region4: #{tpu_custom_call.1} parent=1 // pred_region
      _
    $region5: #{tpu_custom_call.1} parent=1 // pred_fallthru
      _
    // Predicated region
    $region6: #{tpu_custom_call.1} parent=1 // pred_check
      _
    $region7: #{tpu_custom_call.1} parent=1 // pred_check_branch
      %23 = sbr.rel (0) target = $region9
    $region8: #{tpu_custom_call.1} parent=1 // pred_region
      _
    $region9: #{tpu_custom_call.1} parent=1 // pred_fallthru
      _
    // Predicated region
    $region10: #{tpu_custom_call.1} parent=1 // pred_check
      _
    $region11: #{tpu_custom_call.1} parent=1 // pred_check_branch
      %25 = sbr.rel (0) target = $region13
    $region12: #{tpu_custom_call.1} parent=1 // pred_region
      _
    $region13: #{tpu_custom_call.1} parent=1 // pred_fallthru
      _
    // Predicated region
    $region14: #{tpu_custom_call.1} parent=1 // pred_check
      _
    $region15: #{tpu_custom_call.1} parent=1 // pred_check_branch
      %27 = sbr.rel (0) target = $region17
    $region16: #{tpu_custom_call.1} parent=1 // pred_region
      _
    $region17: #{tpu_custom_call.1} parent=1 // pred_fallthru
      _
    // Predicated region
    $region18: #{tpu_custom_call.1} parent=1 // pred_check
      _
    $region19: #{tpu_custom_call.1} parent=1 // pred_check_branch
      %29 = sbr.rel (0) target = $region21
    $region20: #{tpu_custom_call.1} parent=1 // pred_region
      _
    $region21: #{tpu_custom_call.1} parent=1 // pred_fallthru
      _
    // Predicated region
    $region22: #{tpu_custom_call.1} parent=1 // pred_check
      _
    $region23: #{tpu_custom_call.1} parent=1 // pred_check_branch
      %31 = sbr.rel (0) target = $region25
    $region24: #{tpu_custom_call.1} parent=1 // pred_region
      %s33 = ssub.s32 256, 256
      %34 = vsyncadd [#allocation3], %s33
      %s35 = sshll.u32 [#allocation2], 4
      %s36 = int_to_ptr.vmem [resolvable:$true] %s35
      %41 = dma.hbm_to_vmem [thread:$0]  %s5, 256, %s36, [#allocation3], 64, 64, 4
    $region25: #{tpu_custom_call.1} parent=1 // pred_fallthru
      _
    // Predicated region
    $region26: #{tpu_custom_call.1} parent=1 // pred_check
      _
    $region27: #{tpu_custom_call.1} parent=1 // pred_check_branch
      %43 = sbr.rel (0) target = $region29
    $region28: #{tpu_custom_call.1} parent=1 // pred_region
      _
    $region29: #{tpu_custom_call.1} parent=1 // pred_fallthru
      _
    // Predicated region
    $region30: #{tpu_custom_call.1} parent=1 // pred_check
      _
    $region31: #{tpu_custom_call.1} parent=1 // pred_check_branch
      %45 = sbr.rel (0) target = $region33
    $region32: #{tpu_custom_call.1} parent=1 // pred_region
      _
    $region33: #{tpu_custom_call.1} parent=1 // pred_fallthru
      _
    // Predicated region
    $region34: #{tpu_custom_call.1} parent=1 // pred_check
      _
    $region35: #{tpu_custom_call.1} parent=1 // pred_check_branch
      %47 = sbr.rel (0) target = $region37
    $region36: #{tpu_custom_call.1} parent=1 // pred_region
      _
    $region37: #{tpu_custom_call.1} parent=1 // pred_fallthru
      _
    // Predicated region
    $region38: #{tpu_custom_call.1} parent=1 // pred_check
      _
    $region39: #{tpu_custom_call.1} parent=1 // pred_check_branch
      %49 = sbr.rel (0) target = $region41
    $region40: #{tpu_custom_call.1} parent=1 // pred_region
      _
    $region41: #{tpu_custom_call.1} parent=1 // pred_fallthru
      _
    // Predicated region
    $region42: #{tpu_custom_call.1} parent=1 // pred_check
      _
    $region43: #{tpu_custom_call.1} parent=1 // pred_check_branch
      %51 = sbr.rel (0) target = $region45
    $region44: #{tpu_custom_call.1} parent=1 // pred_region
      _
    $region45: #{tpu_custom_call.1} parent=1 // pred_fallthru
      _
    // Predicated region
    $region46: #{tpu_custom_call.1} parent=1 // pred_check
      _
    $region47: #{tpu_custom_call.1} parent=1 // pred_check_branch
      %53 = sbr.rel (0) target = $region49
    $region48: #{tpu_custom_call.1} parent=1 // pred_region
      _
    $region49: #{tpu_custom_call.1} parent=1 // pred_fallthru
      _
    // Predicated region
    $region50: #{tpu_custom_call.1} parent=1 // pred_check
      _
    $region51: #{tpu_custom_call.1} parent=1 // pred_check_branch
      %55 = sbr.rel (0) target = $region53
    $region52: #{tpu_custom_call.1} parent=1 // pred_region
      _
    $region53: #{tpu_custom_call.1} parent=1 // pred_fallthru
      _
    // Predicated region
    $region54: #{tpu_custom_call.1} parent=1 // pred_check
      _
    $region55: #{tpu_custom_call.1} parent=1 // pred_check_branch
      %57 = sbr.rel (0) target = $region57
    $region56: #{tpu_custom_call.1} parent=1 // pred_region
      %58 = dma.done [#allocation3], 256
    $region57: #{tpu_custom_call.1} parent=1 // pred_fallthru
      _
    %v60 = vld [vmem:[%s0] sm:$0xff]
    %v61 = vld [vmem:[%s0 + $0x8] sm:$0xff]
    %v62 = vpack.c.bf16 %v61, %v60
    %v63 = vld [vmem:[%s1] sm:$0xf]
    %v64 = vld [vmem:[%s1 + $0x4] sm:$0xf]
    %v65 = vld [vmem:[%s1 + $0x8] sm:$0xf]
    %v66 = vld [vmem:[%s1 + $0xc] sm:$0xf]
    %v67 = vld [vmem:[%s2] sm:$0x1]
    %v69 = vlaneseq
    %v70 = vshrl.u32 %v69, 7
    %v71 = vsub.s32 0, %v70
    %v72 = vrot.slane %v67, %v71
    %v78 = vunpack.c.l.b16 %v63
    %v79 = vunpack.c.l.b16 %v64
    %v80 = vunpack.c.l.b16 %v65
    %v81 = vunpack.c.l.b16 %v66
    %v82 = vpack.c.b16 %v79, %v78
    %v83 = vpack.c.b16 %v81, %v80
    %vm86 = vcmask 261120
    %v88 = vsel %vm86, %v62, 0
    %90 = vmatprep.subr.bf16.mxu0 0
    %91 = vmatpush1.bf16.msra.mxu0 0
    %92 = vmatprep.subr.bf16.mxu0 0
    %93 = vmatpush1.bf16.msra.mxu0 0
    %94 = vmatprep.subr.bf16.mxu0 0
    %95 = vmatpush1.bf16.msra.mxu0 0
    %96 = vmatprep.subr.bf16.mxu0 0
    %97 = vmatpush1.bf16.msra.mxu0 0
    %98 = vmatprep.subr.bf16.mxu0 0
    %99 = vmatpush1.bf16.msra.mxu0 0
    %100 = vmatprep.subr.bf16.mxu0 0
    %101 = vmatpush1.bf16.msra.mxu0 0
    %102 = vmatprep.subr.bf16.mxu0 0
    %103 = vmatpush1.bf16.msra.mxu0 %v83
    %104 = vmatprep.subr.bf16.mxu0 0
    %105 = vmatpush1.bf16.msra.mxu0 %v82
    %106 = vmatprep.subr.bf16.mxu0 0
    %107 = vmatpush2.bf16.msra.mxu0 0
    %108 = vmatprep.subr.bf16.mxu0 0
    %109 = vmatpush2.bf16.msra.mxu0 0
    %110 = vmatprep.subr.bf16.mxu0 0
    %111 = vmatpush2.bf16.msra.mxu0 0
    %112 = vmatprep.subr.bf16.mxu0 0
    %113 = vmatpush2.bf16.msra.mxu0 0
    %114 = vmatprep.subr.bf16.mxu0 0
    %115 = vmatpush2.bf16.msra.mxu0 0
    %116 = vmatprep.subr.bf16.mxu0 0
    %117 = vmatpush2.bf16.msra.mxu0 0
    %118 = vmatprep.subr.bf16.mxu0 0
    %119 = vmatpush2.bf16.msra.mxu0 0
    %120 = vmatprep.subr.bf16.mxu0 0
    %121 = vmatpush2.bf16.msra.mxu0 0
    %122 = vmatprep.mubr.bf16.mxu0 0
    %123 = vmatmul.mubr.bf16.gmra.mxu0 %v88
    %v124 = vpop.f32.mrf.mxu0
    %v125 = vadd.f32 %v72, %v124
    %v126 = vpop.f32.mrf.mxu0
    %v127 = vpop.f32.mrf.mxu0
    %v128 = vadd.f32 %v72, %v127
    %v129 = vpop.f32.mrf.mxu0
    %130 = vdwg.mxu0
    %v131 = vpack.c.bf16 %v128, %v125
    %v133 = vunpack.c.l.b16 %v131
    %v134 = vunpack.c.h.b16 %v131
    %v135 = vpack.c.b16 %v133, %v133
    %v136 = vpack.c.b16 %v134, %v134
    %137 = vrot.lane.b32.xlu0 %v135, 96
    %v138 = vpop.permute.xlu0 %137
    %vm139 = vcmask 64512
    %v141 = vsel %vm139, %v135, 0
    %v144 = vsel %vm139, %v138, 0
    %146 = vmatprep.subr.bf16.mxu0 0
    %147 = vmatpush1.bf16.xpose.msra.mxu0 0
    %148 = vmatprep.subr.bf16.mxu0 0
    %149 = vmatpush1.bf16.xpose.msra.mxu0 0
    %150 = vmatprep.subr.bf16.mxu0 0
    %151 = vmatpush1.bf16.xpose.msra.mxu0 0
    %152 = vmatprep.subr.bf16.mxu0 0
    %153 = vmatpush1.bf16.xpose.msra.mxu0 0
    %154 = vmatprep.subr.bf16.mxu0 0
    %155 = vmatpush1.bf16.xpose.msra.mxu0 0
    %156 = vmatprep.subr.bf16.mxu0 0
    %157 = vmatpush1.bf16.xpose.msra.mxu0 0
    %158 = vmatprep.subr.bf16.mxu0 0
    %159 = vmatpush1.bf16.xpose.msra.mxu0 0
    %160 = vmatprep.subr.bf16.mxu0 0
    %161 = vmatpush1.bf16.xpose.msra.mxu0 %v144
    %162 = vmatprep.subr.bf16.mxu0 0
    %163 = vmatpush2.bf16.xpose.msra.mxu0 0
    %164 = vmatprep.subr.bf16.mxu0 0
    %165 = vmatpush2.bf16.xpose.msra.mxu0 0
    %166 = vmatprep.subr.bf16.mxu0 0
    %167 = vmatpush2.bf16.xpose.msra.mxu0 0
    %168 = vmatprep.subr.bf16.mxu0 0
    %169 = vmatpush2.bf16.xpose.msra.mxu0 0
    %170 = vmatprep.subr.bf16.mxu0 0
    %171 = vmatpush2.bf16.xpose.msra.mxu0 0
    %172 = vmatprep.subr.bf16.mxu0 0
    %173 = vmatpush2.bf16.xpose.msra.mxu0 0
    %174 = vmatprep.subr.bf16.mxu0 0
    %175 = vmatpush2.bf16.xpose.msra.mxu0 0
    %176 = vmatprep.subr.bf16.mxu0 0
    %177 = vmatpush2.bf16.xpose.msra.mxu0 0
    %178 = vmatprep.mubr.bf16.mxu0 0
    %179 = vmatmul.mubr.bf16.gmra.mxu0 %v141
    %v180 = vpop.f32.mrf.mxu0
    %v181 = vadd.f32 0.0, %v180
    %v182 = vpop.f32.mrf.mxu0
    %v183 = vpop.f32.mrf.mxu0
    %v184 = vpop.f32.mrf.mxu0
    %185 = vdwg.mxu0
    %186 = vrot.lane.b32.xlu0 %v136, 96
    %v187 = vpop.permute.xlu0 %186
    %v189 = vsel %vm139, %v136, 0
    %v192 = vsel %vm139, %v187, 0
    %194 = vmatprep.subr.bf16.mxu0 0
    %195 = vmatpush1.bf16.xpose.msra.mxu0 0
    %196 = vmatprep.subr.bf16.mxu0 0
    %197 = vmatpush1.bf16.xpose.msra.mxu0 0
    %198 = vmatprep.subr.bf16.mxu0 0
    %199 = vmatpush1.bf16.xpose.msra.mxu0 0
    %200 = vmatprep.subr.bf16.mxu0 0
    %201 = vmatpush1.bf16.xpose.msra.mxu0 0
    %202 = vmatprep.subr.bf16.mxu0 0
    %203 = vmatpush1.bf16.xpose.msra.mxu0 0
    %204 = vmatprep.subr.bf16.mxu0 0
    %205 = vmatpush1.bf16.xpose.msra.mxu0 0
    %206 = vmatprep.subr.bf16.mxu0 0
    %207 = vmatpush1.bf16.xpose.msra.mxu0 0
    %208 = vmatprep.subr.bf16.mxu0 0
    %209 = vmatpush1.bf16.xpose.msra.mxu0 %v192
    %210 = vmatprep.subr.bf16.mxu0 0
    %211 = vmatpush2.bf16.xpose.msra.mxu0 0
    %212 = vmatprep.subr.bf16.mxu0 0
    %213 = vmatpush2.bf16.xpose.msra.mxu0 0
    %214 = vmatprep.subr.bf16.mxu0 0
    %215 = vmatpush2.bf16.xpose.msra.mxu0 0
    %216 = vmatprep.subr.bf16.mxu0 0
    %217 = vmatpush2.bf16.xpose.msra.mxu0 0
    %218 = vmatprep.subr.bf16.mxu0 0
    %219 = vmatpush2.bf16.xpose.msra.mxu0 0
    %220 = vmatprep.subr.bf16.mxu0 0
    %221 = vmatpush2.bf16.xpose.msra.mxu0 0
    %222 = vmatprep.subr.bf16.mxu0 0
    %223 = vmatpush2.bf16.xpose.msra.mxu0 0
    %224 = vmatprep.subr.bf16.mxu0 0
    %225 = vmatpush2.bf16.xpose.msra.mxu0 0
    %226 = vmatprep.mubr.bf16.mxu0 0
    %227 = vmatmul.mubr.bf16.gmra.mxu0 %v189
    %v228 = vpop.f32.mrf.mxu0
    %v229 = vadd.f32 0.0, %v228
    %v230 = vpop.f32.mrf.mxu0
    %v231 = vpop.f32.mrf.mxu0
    %v232 = vpop.f32.mrf.mxu0
    %233 = vdwg.mxu0
    %v234 = vsel %vm139, %v181, -inf
    %235 = vmax.xlane.f32.xlu0 %v234
    %v236 = vpop.xlane.xlu0 %235
    %v237 = vsel %vm139, %v229, -inf
    %238 = vmax.xlane.f32.xlu0 %v237
    %v239 = vpop.xlane.xlu0 %238
    %v240 = vsub.f32 %v181, %v236
    %v241 = vsub.f32 %v229, %v239
    %v242 = vmul.f32 %v240, 1.442695
    %v243 = vpow.pop %v242
    %v244 = vmul.f32 %v241, 1.442695
    %v245 = vpow.pop %v244
    %v246 = vsel %vm139, %v243, 0.0
    %247 = vadd.xlane.f32.xlu0 %v246
    %v248 = vpop.xlane.xlu0 %247
    %v249 = vsel %vm139, %v245, 0.0
    %250 = vadd.xlane.f32.xlu0 %v249
    %v251 = vpop.xlane.xlu0 %250
    %v252 = vpack.c.bf16 %v243, %v243
    %v253 = vpack.c.bf16 %v245, %v245
    %254 = vrot.lane.b32.xlu0 %v135, 64
    %v255 = vpop.permute.xlu0 %254
    %v257 = vsel %vm139, %v252, 0
    %vm259 = vcmask 1043456
    %v261 = vsel %vm259, %v255, 0
    %263 = vmatprep.subr.bf16.mxu0 0
    %264 = vmatpush1.bf16.msra.mxu0 0
    %265 = vmatprep.subr.bf16.mxu0 0
    %266 = vmatpush1.bf16.msra.mxu0 0
    %267 = vmatprep.subr.bf16.mxu0 0
    %268 = vmatpush1.bf16.msra.mxu0 0
    %269 = vmatprep.subr.bf16.mxu0 0
    %270 = vmatpush1.bf16.msra.mxu0 0
    %271 = vmatprep.subr.bf16.mxu0 0
    %272 = vmatpush1.bf16.msra.mxu0 0
    %273 = vmatprep.subr.bf16.mxu0 0
    %274 = vmatpush1.bf16.msra.mxu0 0
    %275 = vmatprep.subr.bf16.mxu0 0
    %276 = vmatpush1.bf16.msra.mxu0 0
    %277 = vmatprep.subr.bf16.mxu0 0
    %278 = vmatpush1.bf16.msra.mxu0 %v261
    %279 = vmatprep.subr.bf16.mxu0 0
    %280 = vmatpush2.bf16.msra.mxu0 0
    %281 = vmatprep.subr.bf16.mxu0 0
    %282 = vmatpush2.bf16.msra.mxu0 0
    %283 = vmatprep.subr.bf16.mxu0 0
    %284 = vmatpush2.bf16.msra.mxu0 0
    %285 = vmatprep.subr.bf16.mxu0 0
    %286 = vmatpush2.bf16.msra.mxu0 0
    %287 = vmatprep.subr.bf16.mxu0 0
    %288 = vmatpush2.bf16.msra.mxu0 0
    %289 = vmatprep.subr.bf16.mxu0 0
    %290 = vmatpush2.bf16.msra.mxu0 0
    %291 = vmatprep.subr.bf16.mxu0 0
    %292 = vmatpush2.bf16.msra.mxu0 0
    %293 = vmatprep.subr.bf16.mxu0 0
    %294 = vmatpush2.bf16.msra.mxu0 0
    %295 = vmatprep.mubr.bf16.mxu0 0
    %296 = vmatmul.mubr.bf16.gmra.mxu0 %v257
    %v297 = vpop.f32.mrf.mxu0
    %v298 = vadd.f32 0.0, %v297
    %v299 = vpop.f32.mrf.mxu0
    %v300 = vpop.f32.mrf.mxu0
    %v301 = vpop.f32.mrf.mxu0
    %302 = vdwg.mxu0
    %303 = vrot.lane.b32.xlu0 %v136, 64
    %v304 = vpop.permute.xlu0 %303
    %v306 = vsel %vm139, %v253, 0
    %v309 = vsel %vm259, %v304, 0
    %311 = vmatprep.subr.bf16.mxu0 0
    %312 = vmatpush1.bf16.msra.mxu0 0
    %313 = vmatprep.subr.bf16.mxu0 0
    %314 = vmatpush1.bf16.msra.mxu0 0
    %315 = vmatprep.subr.bf16.mxu0 0
    %316 = vmatpush1.bf16.msra.mxu0 0
    %317 = vmatprep.subr.bf16.mxu0 0
    %318 = vmatpush1.bf16.msra.mxu0 0
    %319 = vmatprep.subr.bf16.mxu0 0
    %320 = vmatpush1.bf16.msra.mxu0 0
    %321 = vmatprep.subr.bf16.mxu0 0
    %322 = vmatpush1.bf16.msra.mxu0 0
    %323 = vmatprep.subr.bf16.mxu0 0
    %324 = vmatpush1.bf16.msra.mxu0 0
    %325 = vmatprep.subr.bf16.mxu0 0
    %326 = vmatpush1.bf16.msra.mxu0 %v309
    %327 = vmatprep.subr.bf16.mxu0 0
    %328 = vmatpush2.bf16.msra.mxu0 0
    %329 = vmatprep.subr.bf16.mxu0 0
    %330 = vmatpush2.bf16.msra.mxu0 0
    %331 = vmatprep.subr.bf16.mxu0 0
    %332 = vmatpush2.bf16.msra.mxu0 0
    %333 = vmatprep.subr.bf16.mxu0 0
    %334 = vmatpush2.bf16.msra.mxu0 0
    %335 = vmatprep.subr.bf16.mxu0 0
    %336 = vmatpush2.bf16.msra.mxu0 0
    %337 = vmatprep.subr.bf16.mxu0 0
    %338 = vmatpush2.bf16.msra.mxu0 0
    %339 = vmatprep.subr.bf16.mxu0 0
    %340 = vmatpush2.bf16.msra.mxu0 0
    %341 = vmatprep.subr.bf16.mxu0 0
    %342 = vmatpush2.bf16.msra.mxu0 0
    %343 = vmatprep.mubr.bf16.mxu0 0
    %344 = vmatmul.mubr.bf16.gmra.mxu0 %v306
    %v345 = vpop.f32.mrf.mxu0
    %v346 = vadd.f32 0.0, %v345
    %v347 = vpop.f32.mrf.mxu0
    %v348 = vpop.f32.mrf.mxu0
    %v349 = vpop.f32.mrf.mxu0
    %350 = vdwg.mxu0
    %v351 = vrcp.pop %v248
    %v352 = vrcp.pop %v251
    %v353 = vmul.f32 %v298, %v351
    %v354 = vmul.f32 %v346, %v352
    %v355 = vpack.c.bf16 %v354, %v353
    %v356 = vld [vmem:[%s3] sm:$0xf]
    %357 = vrot.lane.b32.xlu0 %v135, 120
    %v358 = vpop.permute.xlu0 %357
    %359 = vrot.lane.b32.xlu0 %v135, 88
    %v360 = vpop.permute.xlu0 %359
    %v362 = vsel %vm139, %v358, 0
    %v365 = vsel %vm139, %v360, 0
    %367 = vmatprep.subr.bf16.mxu0 0
    %368 = vmatpush1.bf16.xpose.msra.mxu0 0
    %369 = vmatprep.subr.bf16.mxu0 0
    %370 = vmatpush1.bf16.xpose.msra.mxu0 0
    %371 = vmatprep.subr.bf16.mxu0 0
    %372 = vmatpush1.bf16.xpose.msra.mxu0 0
    %373 = vmatprep.subr.bf16.mxu0 0
    %374 = vmatpush1.bf16.xpose.msra.mxu0 0
    %375 = vmatprep.subr.bf16.mxu0 0
    %376 = vmatpush1.bf16.xpose.msra.mxu0 0
    %377 = vmatprep.subr.bf16.mxu0 0
    %378 = vmatpush1.bf16.xpose.msra.mxu0 0
    %379 = vmatprep.subr.bf16.mxu0 0
    %380 = vmatpush1.bf16.xpose.msra.mxu0 0
    %381 = vmatprep.subr.bf16.mxu0 0
    %382 = vmatpush1.bf16.xpose.msra.mxu0 %v365
    %383 = vmatprep.subr.bf16.mxu0 0
    %384 = vmatpush2.bf16.xpose.msra.mxu0 0
    %385 = vmatprep.subr.bf16.mxu0 0
    %386 = vmatpush2.bf16.xpose.msra.mxu0 0
    %387 = vmatprep.subr.bf16.mxu0 0
    %388 = vmatpush2.bf16.xpose.msra.mxu0 0
    %389 = vmatprep.subr.bf16.mxu0 0
    %390 = vmatpush2.bf16.xpose.msra.mxu0 0
    %391 = vmatprep.subr.bf16.mxu0 0
    %392 = vmatpush2.bf16.xpose.msra.mxu0 0
    %393 = vmatprep.subr.bf16.mxu0 0
    %394 = vmatpush2.bf16.xpose.msra.mxu0 0
    %395 = vmatprep.subr.bf16.mxu0 0
    %396 = vmatpush2.bf16.xpose.msra.mxu0 0
    %397 = vmatprep.subr.bf16.mxu0 0
    %398 = vmatpush2.bf16.xpose.msra.mxu0 0
    %399 = vmatprep.mubr.bf16.mxu0 0
    %400 = vmatmul.mubr.bf16.gmra.mxu0 %v362
    %v401 = vpop.f32.mrf.mxu0
    %v402 = vadd.f32 0.0, %v401
    %v403 = vpop.f32.mrf.mxu0
    %v404 = vpop.f32.mrf.mxu0
    %v405 = vpop.f32.mrf.mxu0
    %406 = vdwg.mxu0
    %407 = vrot.lane.b32.xlu0 %v136, 120
    %v408 = vpop.permute.xlu0 %407
    %409 = vrot.lane.b32.xlu0 %v136, 88
    %v410 = vpop.permute.xlu0 %409
    %v412 = vsel %vm139, %v408, 0
    %v415 = vsel %vm139, %v410, 0
    %417 = vmatprep.subr.bf16.mxu0 0
    %418 = vmatpush1.bf16.xpose.msra.mxu0 0
    %419 = vmatprep.subr.bf16.mxu0 0
    %420 = vmatpush1.bf16.xpose.msra.mxu0 0
    %421 = vmatprep.subr.bf16.mxu0 0
    %422 = vmatpush1.bf16.xpose.msra.mxu0 0
    %423 = vmatprep.subr.bf16.mxu0 0
    %424 = vmatpush1.bf16.xpose.msra.mxu0 0
    %425 = vmatprep.subr.bf16.mxu0 0
    %426 = vmatpush1.bf16.xpose.msra.mxu0 0
    %427 = vmatprep.subr.bf16.mxu0 0
    %428 = vmatpush1.bf16.xpose.msra.mxu0 0
    %429 = vmatprep.subr.bf16.mxu0 0
    %430 = vmatpush1.bf16.xpose.msra.mxu0 0
    %431 = vmatprep.subr.bf16.mxu0 0
    %432 = vmatpush1.bf16.xpose.msra.mxu0 %v415
    %433 = vmatprep.subr.bf16.mxu0 0
    %434 = vmatpush2.bf16.xpose.msra.mxu0 0
    %435 = vmatprep.subr.bf16.mxu0 0
    %436 = vmatpush2.bf16.xpose.msra.mxu0 0
    %437 = vmatprep.subr.bf16.mxu0 0
    %438 = vmatpush2.bf16.xpose.msra.mxu0 0
    %439 = vmatprep.subr.bf16.mxu0 0
    %440 = vmatpush2.bf16.xpose.msra.mxu0 0
    %441 = vmatprep.subr.bf16.mxu0 0
    %442 = vmatpush2.bf16.xpose.msra.mxu0 0
    %443 = vmatprep.subr.bf16.mxu0 0
    %444 = vmatpush2.bf16.xpose.msra.mxu0 0
    %445 = vmatprep.subr.bf16.mxu0 0
    %446 = vmatpush2.bf16.xpose.msra.mxu0 0
    %447 = vmatprep.subr.bf16.mxu0 0
    %448 = vmatpush2.bf16.xpose.msra.mxu0 0
    %449 = vmatprep.mubr.bf16.mxu0 0
    %450 = vmatmul.mubr.bf16.gmra.mxu0 %v412
    %v451 = vpop.f32.mrf.mxu0
    %v452 = vadd.f32 0.0, %v451
    %v453 = vpop.f32.mrf.mxu0
    %v454 = vpop.f32.mrf.mxu0
    %v455 = vpop.f32.mrf.mxu0
    %456 = vdwg.mxu0
    %v457 = vsel %vm139, %v402, -inf
    %458 = vmax.xlane.f32.xlu0 %v457
    %v459 = vpop.xlane.xlu0 %458
    %v460 = vsel %vm139, %v452, -inf
    %461 = vmax.xlane.f32.xlu0 %v460
    %v462 = vpop.xlane.xlu0 %461
    %v463 = vsub.f32 %v402, %v459
    %v464 = vsub.f32 %v452, %v462
    %v465 = vmul.f32 %v463, 1.442695
    %v466 = vpow.pop %v465
    %v467 = vmul.f32 %v464, 1.442695
    %v468 = vpow.pop %v467
    %v469 = vsel %vm139, %v466, 0.0
    %470 = vadd.xlane.f32.xlu0 %v469
    %v471 = vpop.xlane.xlu0 %470
    %v472 = vsel %vm139, %v468, 0.0
    %473 = vadd.xlane.f32.xlu0 %v472
    %v474 = vpop.xlane.xlu0 %473
    %v475 = vpack.c.bf16 %v466, %v466
    %v476 = vpack.c.bf16 %v468, %v468
    %477 = vrot.lane.b32.xlu0 %v135, 56
    %v478 = vpop.permute.xlu0 %477
    %v480 = vsel %vm139, %v475, 0
    %v483 = vsel %vm259, %v478, 0
    %485 = vmatprep.subr.bf16.mxu0 0
    %486 = vmatpush1.bf16.msra.mxu0 0
    %487 = vmatprep.subr.bf16.mxu0 0
    %488 = vmatpush1.bf16.msra.mxu0 0
    %489 = vmatprep.subr.bf16.mxu0 0
    %490 = vmatpush1.bf16.msra.mxu0 0
    %491 = vmatprep.subr.bf16.mxu0 0
    %492 = vmatpush1.bf16.msra.mxu0 0
    %493 = vmatprep.subr.bf16.mxu0 0
    %494 = vmatpush1.bf16.msra.mxu0 0
    %495 = vmatprep.subr.bf16.mxu0 0
    %496 = vmatpush1.bf16.msra.mxu0 0
    %497 = vmatprep.subr.bf16.mxu0 0
    %498 = vmatpush1.bf16.msra.mxu0 0
    %499 = vmatprep.subr.bf16.mxu0 0
    %500 = vmatpush1.bf16.msra.mxu0 %v483
    %501 = vmatprep.subr.bf16.mxu0 0
    %502 = vmatpush2.bf16.msra.mxu0 0
    %503 = vmatprep.subr.bf16.mxu0 0
    %504 = vmatpush2.bf16.msra.mxu0 0
    %505 = vmatprep.subr.bf16.mxu0 0
    %506 = vmatpush2.bf16.msra.mxu0 0
    %507 = vmatprep.subr.bf16.mxu0 0
    %508 = vmatpush2.bf16.msra.mxu0 0
    %509 = vmatprep.subr.bf16.mxu0 0
    %510 = vmatpush2.bf16.msra.mxu0 0
    %511 = vmatprep.subr.bf16.mxu0 0
    %512 = vmatpush2.bf16.msra.mxu0 0
    %513 = vmatprep.subr.bf16.mxu0 0
    %514 = vmatpush2.bf16.msra.mxu0 0
    %515 = vmatprep.subr.bf16.mxu0 0
    %516 = vmatpush2.bf16.msra.mxu0 0
    %517 = vmatprep.mubr.bf16.mxu0 0
    %518 = vmatmul.mubr.bf16.gmra.mxu0 %v480
    %v519 = vpop.f32.mrf.mxu0
    %v520 = vadd.f32 0.0, %v519
    %v521 = vpop.f32.mrf.mxu0
    %v522 = vpop.f32.mrf.mxu0
    %v523 = vpop.f32.mrf.mxu0
    %524 = vdwg.mxu0
    %525 = vrot.lane.b32.xlu0 %v136, 56
    %v526 = vpop.permute.xlu0 %525
    %v528 = vsel %vm139, %v476, 0
    %v531 = vsel %vm259, %v526, 0
    %533 = vmatprep.subr.bf16.mxu0 0
    %534 = vmatpush1.bf16.msra.mxu0 0
    %535 = vmatprep.subr.bf16.mxu0 0
    %536 = vmatpush1.bf16.msra.mxu0 0
    %537 = vmatprep.subr.bf16.mxu0 0
    %538 = vmatpush1.bf16.msra.mxu0 0
    %539 = vmatprep.subr.bf16.mxu0 0
    %540 = vmatpush1.bf16.msra.mxu0 0
    %541 = vmatprep.subr.bf16.mxu0 0
    %542 = vmatpush1.bf16.msra.mxu0 0
    %543 = vmatprep.subr.bf16.mxu0 0
    %544 = vmatpush1.bf16.msra.mxu0 0
    %545 = vmatprep.subr.bf16.mxu0 0
    %546 = vmatpush1.bf16.msra.mxu0 0
    %547 = vmatprep.subr.bf16.mxu0 0
    %548 = vmatpush1.bf16.msra.mxu0 %v531
    %549 = vmatprep.subr.bf16.mxu0 0
    %550 = vmatpush2.bf16.msra.mxu0 0
    %551 = vmatprep.subr.bf16.mxu0 0
    %552 = vmatpush2.bf16.msra.mxu0 0
    %553 = vmatprep.subr.bf16.mxu0 0
    %554 = vmatpush2.bf16.msra.mxu0 0
    %555 = vmatprep.subr.bf16.mxu0 0
    %556 = vmatpush2.bf16.msra.mxu0 0
    %557 = vmatprep.subr.bf16.mxu0 0
    %558 = vmatpush2.bf16.msra.mxu0 0
    %559 = vmatprep.subr.bf16.mxu0 0
    %560 = vmatpush2.bf16.msra.mxu0 0
    %561 = vmatprep.subr.bf16.mxu0 0
    %562 = vmatpush2.bf16.msra.mxu0 0
    %563 = vmatprep.subr.bf16.mxu0 0
    %564 = vmatpush2.bf16.msra.mxu0 0
    %565 = vmatprep.mubr.bf16.mxu0 0
    %566 = vmatmul.mubr.bf16.gmra.mxu0 %v528
    %v567 = vpop.f32.mrf.mxu0
    %v568 = vadd.f32 0.0, %v567
    %v569 = vpop.f32.mrf.mxu0
    %v570 = vpop.f32.mrf.mxu0
    %v571 = vpop.f32.mrf.mxu0
    %572 = vdwg.mxu0
    %v573 = vrcp.pop %v471
    %v574 = vrcp.pop %v474
    %v575 = vmul.f32 %v520, %v573
    %v576 = vmul.f32 %v568, %v574
    %v577 = vpack.c.bf16 %v576, %v575
    %v578 = vld [vmem:[%s3 + $0x4] sm:$0xf]
    %v580 = vsel %vm139, %v577, 0
    %v583 = vsel %vm259, %v578, 0
    %585 = vmatprep.subr.bf16.mxu0 0
    %586 = vmatpush1.bf16.msra.mxu0 0
    %587 = vmatprep.subr.bf16.mxu0 0
    %588 = vmatpush1.bf16.msra.mxu0 0
    %589 = vmatprep.subr.bf16.mxu0 0
    %590 = vmatpush1.bf16.msra.mxu0 0
    %591 = vmatprep.subr.bf16.mxu0 0
    %592 = vmatpush1.bf16.msra.mxu0 0
    %593 = vmatprep.subr.bf16.mxu0 0
    %594 = vmatpush1.bf16.msra.mxu0 0
    %595 = vmatprep.subr.bf16.mxu0 0
    %596 = vmatpush1.bf16.msra.mxu0 0
    %597 = vmatprep.subr.bf16.mxu0 0
    %598 = vmatpush1.bf16.msra.mxu0 0
    %599 = vmatprep.subr.bf16.mxu0 0
    %600 = vmatpush1.bf16.msra.mxu0 %v583
    %601 = vmatprep.subr.bf16.mxu0 0
    %602 = vmatpush2.bf16.msra.mxu0 0
    %603 = vmatprep.subr.bf16.mxu0 0
    %604 = vmatpush2.bf16.msra.mxu0 0
    %605 = vmatprep.subr.bf16.mxu0 0
    %606 = vmatpush2.bf16.msra.mxu0 0
    %607 = vmatprep.subr.bf16.mxu0 0
    %608 = vmatpush2.bf16.msra.mxu0 0
    %609 = vmatprep.subr.bf16.mxu0 0
    %610 = vmatpush2.bf16.msra.mxu0 0
    %611 = vmatprep.subr.bf16.mxu0 0
    %612 = vmatpush2.bf16.msra.mxu0 0
    %613 = vmatprep.subr.bf16.mxu0 0
    %614 = vmatpush2.bf16.msra.mxu0 0
    %615 = vmatprep.subr.bf16.mxu0 0
    %616 = vmatpush2.bf16.msra.mxu0 0
    %617 = vmatprep.mubr.bf16.mxu0 0
    %618 = vmatmul.mubr.bf16.gmra.mxu0 %v580
    %v619 = vpop.f32.mrf.mxu0
    %v620 = vadd.f32 0.0, %v619
    %v621 = vpop.f32.mrf.mxu0
    %v622 = vpop.f32.mrf.mxu0
    %v623 = vadd.f32 0.0, %v622
    %v624 = vpop.f32.mrf.mxu0
    %625 = vdwg.mxu0
    %v627 = vsel %vm139, %v355, 0
    %v630 = vsel %vm259, %v356, 0
    %632 = vmatprep.subr.bf16.mxu0 0
    %633 = vmatpush1.bf16.msra.mxu0 0
    %634 = vmatprep.subr.bf16.mxu0 0
    %635 = vmatpush1.bf16.msra.mxu0 0
    %636 = vmatprep.subr.bf16.mxu0 0
    %637 = vmatpush1.bf16.msra.mxu0 0
    %638 = vmatprep.subr.bf16.mxu0 0
    %639 = vmatpush1.bf16.msra.mxu0 0
    %640 = vmatprep.subr.bf16.mxu0 0
    %641 = vmatpush1.bf16.msra.mxu0 0
    %642 = vmatprep.subr.bf16.mxu0 0
    %643 = vmatpush1.bf16.msra.mxu0 0
    %644 = vmatprep.subr.bf16.mxu0 0
    %645 = vmatpush1.bf16.msra.mxu0 0
    %646 = vmatprep.subr.bf16.mxu0 0
    %647 = vmatpush1.bf16.msra.mxu0 %v630
    %648 = vmatprep.subr.bf16.mxu0 0
    %649 = vmatpush2.bf16.msra.mxu0 0
    %650 = vmatprep.subr.bf16.mxu0 0
    %651 = vmatpush2.bf16.msra.mxu0 0
    %652 = vmatprep.subr.bf16.mxu0 0
    %653 = vmatpush2.bf16.msra.mxu0 0
    %654 = vmatprep.subr.bf16.mxu0 0
    %655 = vmatpush2.bf16.msra.mxu0 0
    %656 = vmatprep.subr.bf16.mxu0 0
    %657 = vmatpush2.bf16.msra.mxu0 0
    %658 = vmatprep.subr.bf16.mxu0 0
    %659 = vmatpush2.bf16.msra.mxu0 0
    %660 = vmatprep.subr.bf16.mxu0 0
    %661 = vmatpush2.bf16.msra.mxu0 0
    %662 = vmatprep.subr.bf16.mxu0 0
    %663 = vmatpush2.bf16.msra.mxu0 0
    %664 = vmatprep.mubr.bf16.mxu0 0
    %665 = vmatmul.mubr.bf16.gmra.mxu0 %v627
    %v666 = vpop.f32.mrf.mxu0
    %v667 = vadd.f32 %v620, %v666
    %v668 = vpop.f32.mrf.mxu0
    %v669 = vpop.f32.mrf.mxu0
    %v670 = vadd.f32 %v623, %v669
    %v671 = vpop.f32.mrf.mxu0
    %672 = vdwg.mxu0
    %673 = vrot.lane.b32.xlu0 %v135, 112
    %v674 = vpop.permute.xlu0 %673
    %675 = vrot.lane.b32.xlu0 %v135, 80
    %v676 = vpop.permute.xlu0 %675
    %v678 = vsel %vm139, %v674, 0
    %v681 = vsel %vm139, %v676, 0
    %683 = vmatprep.subr.bf16.mxu0 0
    %684 = vmatpush1.bf16.xpose.msra.mxu0 0
    %685 = vmatprep.subr.bf16.mxu0 0
    %686 = vmatpush1.bf16.xpose.msra.mxu0 0
    %687 = vmatprep.subr.bf16.mxu0 0
    %688 = vmatpush1.bf16.xpose.msra.mxu0 0
    %689 = vmatprep.subr.bf16.mxu0 0
    %690 = vmatpush1.bf16.xpose.msra.mxu0 0
    %691 = vmatprep.subr.bf16.mxu0 0
    %692 = vmatpush1.bf16.xpose.msra.mxu0 0
    %693 = vmatprep.subr.bf16.mxu0 0
    %694 = vmatpush1.bf16.xpose.msra.mxu0 0
    %695 = vmatprep.subr.bf16.mxu0 0
    %696 = vmatpush1.bf16.xpose.msra.mxu0 0
    %697 = vmatprep.subr.bf16.mxu0 0
    %698 = vmatpush1.bf16.xpose.msra.mxu0 %v681
    %699 = vmatprep.subr.bf16.mxu0 0
    %700 = vmatpush2.bf16.xpose.msra.mxu0 0
    %701 = vmatprep.subr.bf16.mxu0 0
    %702 = vmatpush2.bf16.xpose.msra.mxu0 0
    %703 = vmatprep.subr.bf16.mxu0 0
    %704 = vmatpush2.bf16.xpose.msra.mxu0 0
    %705 = vmatprep.subr.bf16.mxu0 0
    %706 = vmatpush2.bf16.xpose.msra.mxu0 0
    %707 = vmatprep.subr.bf16.mxu0 0
    %708 = vmatpush2.bf16.xpose.msra.mxu0 0
    %709 = vmatprep.subr.bf16.mxu0 0
    %710 = vmatpush2.bf16.xpose.msra.mxu0 0
    %711 = vmatprep.subr.bf16.mxu0 0
    %712 = vmatpush2.bf16.xpose.msra.mxu0 0
    %713 = vmatprep.subr.bf16.mxu0 0
    %714 = vmatpush2.bf16.xpose.msra.mxu0 0
    %715 = vmatprep.mubr.bf16.mxu0 0
    %716 = vmatmul.mubr.bf16.gmra.mxu0 %v678
    %v717 = vpop.f32.mrf.mxu0
    %v718 = vadd.f32 0.0, %v717
    %v719 = vpop.f32.mrf.mxu0
    %v720 = vpop.f32.mrf.mxu0
    %v721 = vpop.f32.mrf.mxu0
    %722 = vdwg.mxu0
    %723 = vrot.lane.b32.xlu0 %v136, 112
    %v724 = vpop.permute.xlu0 %723
    %725 = vrot.lane.b32.xlu0 %v136, 80
    %v726 = vpop.permute.xlu0 %725
    %v728 = vsel %vm139, %v724, 0
    %v731 = vsel %vm139, %v726, 0
    %733 = vmatprep.subr.bf16.mxu0 0
    %734 = vmatpush1.bf16.xpose.msra.mxu0 0
    %735 = vmatprep.subr.bf16.mxu0 0
    %736 = vmatpush1.bf16.xpose.msra.mxu0 0
    %737 = vmatprep.subr.bf16.mxu0 0
    %738 = vmatpush1.bf16.xpose.msra.mxu0 0
    %739 = vmatprep.subr.bf16.mxu0 0
    %740 = vmatpush1.bf16.xpose.msra.mxu0 0
    %741 = vmatprep.subr.bf16.mxu0 0
    %742 = vmatpush1.bf16.xpose.msra.mxu0 0
    %743 = vmatprep.subr.bf16.mxu0 0
    %744 = vmatpush1.bf16.xpose.msra.mxu0 0
    %745 = vmatprep.subr.bf16.mxu0 0
    %746 = vmatpush1.bf16.xpose.msra.mxu0 0
    %747 = vmatprep.subr.bf16.mxu0 0
    %748 = vmatpush1.bf16.xpose.msra.mxu0 %v731
    %749 = vmatprep.subr.bf16.mxu0 0
    %750 = vmatpush2.bf16.xpose.msra.mxu0 0
    %751 = vmatprep.subr.bf16.mxu0 0
    %752 = vmatpush2.bf16.xpose.msra.mxu0 0
    %753 = vmatprep.subr.bf16.mxu0 0
    %754 = vmatpush2.bf16.xpose.msra.mxu0 0
    %755 = vmatprep.subr.bf16.mxu0 0
    %756 = vmatpush2.bf16.xpose.msra.mxu0 0
    %757 = vmatprep.subr.bf16.mxu0 0
    %758 = vmatpush2.bf16.xpose.msra.mxu0 0
    %759 = vmatprep.subr.bf16.mxu0 0
    %760 = vmatpush2.bf16.xpose.msra.mxu0 0
    %761 = vmatprep.subr.bf16.mxu0 0
    %762 = vmatpush2.bf16.xpose.msra.mxu0 0
    %763 = vmatprep.subr.bf16.mxu0 0
    %764 = vmatpush2.bf16.xpose.msra.mxu0 0
    %765 = vmatprep.mubr.bf16.mxu0 0
    %766 = vmatmul.mubr.bf16.gmra.mxu0 %v728
    %v767 = vpop.f32.mrf.mxu0
    %v768 = vadd.f32 0.0, %v767
    %v769 = vpop.f32.mrf.mxu0
    %v770 = vpop.f32.mrf.mxu0
    %v771 = vpop.f32.mrf.mxu0
    %772 = vdwg.mxu0
    %v773 = vsel %vm139, %v718, -inf
    %774 = vmax.xlane.f32.xlu0 %v773
    %v775 = vpop.xlane.xlu0 %774
    %v776 = vsel %vm139, %v768, -inf
    %777 = vmax.xlane.f32.xlu0 %v776
    %v778 = vpop.xlane.xlu0 %777
    %v779 = vsub.f32 %v718, %v775
    %v780 = vsub.f32 %v768, %v778
    %v781 = vmul.f32 %v779, 1.442695
    %v782 = vpow.pop %v781
    %v783 = vmul.f32 %v780, 1.442695
    %v784 = vpow.pop %v783
    %v785 = vsel %vm139, %v782, 0.0
    %786 = vadd.xlane.f32.xlu0 %v785
    %v787 = vpop.xlane.xlu0 %786
    %v788 = vsel %vm139, %v784, 0.0
    %789 = vadd.xlane.f32.xlu0 %v788
    %v790 = vpop.xlane.xlu0 %789
    %v791 = vpack.c.bf16 %v782, %v782
    %v792 = vpack.c.bf16 %v784, %v784
    %793 = vrot.lane.b32.xlu0 %v135, 48
    %v794 = vpop.permute.xlu0 %793
    %v796 = vsel %vm139, %v791, 0
    %v799 = vsel %vm259, %v794, 0
    %801 = vmatprep.subr.bf16.mxu0 0
    %802 = vmatpush1.bf16.msra.mxu0 0
    %803 = vmatprep.subr.bf16.mxu0 0
    %804 = vmatpush1.bf16.msra.mxu0 0
    %805 = vmatprep.subr.bf16.mxu0 0
    %806 = vmatpush1.bf16.msra.mxu0 0
    %807 = vmatprep.subr.bf16.mxu0 0
    %808 = vmatpush1.bf16.msra.mxu0 0
    %809 = vmatprep.subr.bf16.mxu0 0
    %810 = vmatpush1.bf16.msra.mxu0 0
    %811 = vmatprep.subr.bf16.mxu0 0
    %812 = vmatpush1.bf16.msra.mxu0 0
    %813 = vmatprep.subr.bf16.mxu0 0
    %814 = vmatpush1.bf16.msra.mxu0 0
    %815 = vmatprep.subr.bf16.mxu0 0
    %816 = vmatpush1.bf16.msra.mxu0 %v799
    %817 = vmatprep.subr.bf16.mxu0 0
    %818 = vmatpush2.bf16.msra.mxu0 0
    %819 = vmatprep.subr.bf16.mxu0 0
    %820 = vmatpush2.bf16.msra.mxu0 0
    %821 = vmatprep.subr.bf16.mxu0 0
    %822 = vmatpush2.bf16.msra.mxu0 0
    %823 = vmatprep.subr.bf16.mxu0 0
    %824 = vmatpush2.bf16.msra.mxu0 0
    %825 = vmatprep.subr.bf16.mxu0 0
    %826 = vmatpush2.bf16.msra.mxu0 0
    %827 = vmatprep.subr.bf16.mxu0 0
    %828 = vmatpush2.bf16.msra.mxu0 0
    %829 = vmatprep.subr.bf16.mxu0 0
    %830 = vmatpush2.bf16.msra.mxu0 0
    %831 = vmatprep.subr.bf16.mxu0 0
    %832 = vmatpush2.bf16.msra.mxu0 0
    %833 = vmatprep.mubr.bf16.mxu0 0
    %834 = vmatmul.mubr.bf16.gmra.mxu0 %v796
    %v835 = vpop.f32.mrf.mxu0
    %v836 = vadd.f32 0.0, %v835
    %v837 = vpop.f32.mrf.mxu0
    %v838 = vpop.f32.mrf.mxu0
    %v839 = vpop.f32.mrf.mxu0
    %840 = vdwg.mxu0
    %841 = vrot.lane.b32.xlu0 %v136, 48
    %v842 = vpop.permute.xlu0 %841
    %v844 = vsel %vm139, %v792, 0
    %v847 = vsel %vm259, %v842, 0
    %849 = vmatprep.subr.bf16.mxu0 0
    %850 = vmatpush1.bf16.msra.mxu0 0
    %851 = vmatprep.subr.bf16.mxu0 0
    %852 = vmatpush1.bf16.msra.mxu0 0
    %853 = vmatprep.subr.bf16.mxu0 0
    %854 = vmatpush1.bf16.msra.mxu0 0
    %855 = vmatprep.subr.bf16.mxu0 0
    %856 = vmatpush1.bf16.msra.mxu0 0
    %857 = vmatprep.subr.bf16.mxu0 0
    %858 = vmatpush1.bf16.msra.mxu0 0
    %859 = vmatprep.subr.bf16.mxu0 0
    %860 = vmatpush1.bf16.msra.mxu0 0
    %861 = vmatprep.subr.bf16.mxu0 0
    %862 = vmatpush1.bf16.msra.mxu0 0
    %863 = vmatprep.subr.bf16.mxu0 0
    %864 = vmatpush1.bf16.msra.mxu0 %v847
    %865 = vmatprep.subr.bf16.mxu0 0
    %866 = vmatpush2.bf16.msra.mxu0 0
    %867 = vmatprep.subr.bf16.mxu0 0
    %868 = vmatpush2.bf16.msra.mxu0 0
    %869 = vmatprep.subr.bf16.mxu0 0
    %870 = vmatpush2.bf16.msra.mxu0 0
    %871 = vmatprep.subr.bf16.mxu0 0
    %872 = vmatpush2.bf16.msra.mxu0 0
    %873 = vmatprep.subr.bf16.mxu0 0
    %874 = vmatpush2.bf16.msra.mxu0 0
    %875 = vmatprep.subr.bf16.mxu0 0
    %876 = vmatpush2.bf16.msra.mxu0 0
    %877 = vmatprep.subr.bf16.mxu0 0
    %878 = vmatpush2.bf16.msra.mxu0 0
    %879 = vmatprep.subr.bf16.mxu0 0
    %880 = vmatpush2.bf16.msra.mxu0 0
    %881 = vmatprep.mubr.bf16.mxu0 0
    %882 = vmatmul.mubr.bf16.gmra.mxu0 %v844
    %v883 = vpop.f32.mrf.mxu0
    %v884 = vadd.f32 0.0, %v883
    %v885 = vpop.f32.mrf.mxu0
    %v886 = vpop.f32.mrf.mxu0
    %v887 = vpop.f32.mrf.mxu0
    %888 = vdwg.mxu0
    %v889 = vrcp.pop %v787
    %v890 = vrcp.pop %v790
    %v891 = vmul.f32 %v836, %v889
    %v892 = vmul.f32 %v884, %v890
    %v893 = vpack.c.bf16 %v892, %v891
    %v894 = vld [vmem:[%s3 + $0x8] sm:$0xf]
    %v896 = vsel %vm139, %v893, 0
    %v899 = vsel %vm259, %v894, 0
    %901 = vmatprep.subr.bf16.mxu0 0
    %902 = vmatpush1.bf16.msra.mxu0 0
    %903 = vmatprep.subr.bf16.mxu0 0
    %904 = vmatpush1.bf16.msra.mxu0 0
    %905 = vmatprep.subr.bf16.mxu0 0
    %906 = vmatpush1.bf16.msra.mxu0 0
    %907 = vmatprep.subr.bf16.mxu0 0
    %908 = vmatpush1.bf16.msra.mxu0 0
    %909 = vmatprep.subr.bf16.mxu0 0
    %910 = vmatpush1.bf16.msra.mxu0 0
    %911 = vmatprep.subr.bf16.mxu0 0
    %912 = vmatpush1.bf16.msra.mxu0 0
    %913 = vmatprep.subr.bf16.mxu0 0
    %914 = vmatpush1.bf16.msra.mxu0 0
    %915 = vmatprep.subr.bf16.mxu0 0
    %916 = vmatpush1.bf16.msra.mxu0 %v899
    %917 = vmatprep.subr.bf16.mxu0 0
    %918 = vmatpush2.bf16.msra.mxu0 0
    %919 = vmatprep.subr.bf16.mxu0 0
    %920 = vmatpush2.bf16.msra.mxu0 0
    %921 = vmatprep.subr.bf16.mxu0 0
    %922 = vmatpush2.bf16.msra.mxu0 0
    %923 = vmatprep.subr.bf16.mxu0 0
    %924 = vmatpush2.bf16.msra.mxu0 0
    %925 = vmatprep.subr.bf16.mxu0 0
    %926 = vmatpush2.bf16.msra.mxu0 0
    %927 = vmatprep.subr.bf16.mxu0 0
    %928 = vmatpush2.bf16.msra.mxu0 0
    %929 = vmatprep.subr.bf16.mxu0 0
    %930 = vmatpush2.bf16.msra.mxu0 0
    %931 = vmatprep.subr.bf16.mxu0 0
    %932 = vmatpush2.bf16.msra.mxu0 0
    %933 = vmatprep.mubr.bf16.mxu0 0
    %934 = vmatmul.mubr.bf16.gmra.mxu0 %v896
    %v935 = vpop.f32.mrf.mxu0
    %v936 = vadd.f32 0.0, %v935
    %v937 = vpop.f32.mrf.mxu0
    %v938 = vpop.f32.mrf.mxu0
    %v939 = vadd.f32 0.0, %v938
    %v940 = vpop.f32.mrf.mxu0
    %941 = vdwg.mxu0
    %v942 = vadd.f32 %v667, %v936
    %v943 = vadd.f32 %v670, %v939
    %944 = vrot.lane.b32.xlu0 %v135, 104
    %v945 = vpop.permute.xlu0 %944
    %946 = vrot.lane.b32.xlu0 %v135, 72
    %v947 = vpop.permute.xlu0 %946
    %v949 = vsel %vm139, %v945, 0
    %v952 = vsel %vm139, %v947, 0
    %954 = vmatprep.subr.bf16.mxu0 0
    %955 = vmatpush1.bf16.xpose.msra.mxu0 0
    %956 = vmatprep.subr.bf16.mxu0 0
    %957 = vmatpush1.bf16.xpose.msra.mxu0 0
    %958 = vmatprep.subr.bf16.mxu0 0
    %959 = vmatpush1.bf16.xpose.msra.mxu0 0
    %960 = vmatprep.subr.bf16.mxu0 0
    %961 = vmatpush1.bf16.xpose.msra.mxu0 0
    %962 = vmatprep.subr.bf16.mxu0 0
    %963 = vmatpush1.bf16.xpose.msra.mxu0 0
    %964 = vmatprep.subr.bf16.mxu0 0
    %965 = vmatpush1.bf16.xpose.msra.mxu0 0
    %966 = vmatprep.subr.bf16.mxu0 0
    %967 = vmatpush1.bf16.xpose.msra.mxu0 0
    %968 = vmatprep.subr.bf16.mxu0 0
    %969 = vmatpush1.bf16.xpose.msra.mxu0 %v952
    %970 = vmatprep.subr.bf16.mxu0 0
    %971 = vmatpush2.bf16.xpose.msra.mxu0 0
    %972 = vmatprep.subr.bf16.mxu0 0
    %973 = vmatpush2.bf16.xpose.msra.mxu0 0
    %974 = vmatprep.subr.bf16.mxu0 0
    %975 = vmatpush2.bf16.xpose.msra.mxu0 0
    %976 = vmatprep.subr.bf16.mxu0 0
    %977 = vmatpush2.bf16.xpose.msra.mxu0 0
    %978 = vmatprep.subr.bf16.mxu0 0
    %979 = vmatpush2.bf16.xpose.msra.mxu0 0
    %980 = vmatprep.subr.bf16.mxu0 0
    %981 = vmatpush2.bf16.xpose.msra.mxu0 0
    %982 = vmatprep.subr.bf16.mxu0 0
    %983 = vmatpush2.bf16.xpose.msra.mxu0 0
    %984 = vmatprep.subr.bf16.mxu0 0
    %985 = vmatpush2.bf16.xpose.msra.mxu0 0
    %986 = vmatprep.mubr.bf16.mxu0 0
    %987 = vmatmul.mubr.bf16.gmra.mxu0 %v949
    %v988 = vpop.f32.mrf.mxu0
    %v989 = vadd.f32 0.0, %v988
    %v990 = vpop.f32.mrf.mxu0
    %v991 = vpop.f32.mrf.mxu0
    %v992 = vpop.f32.mrf.mxu0
    %993 = vdwg.mxu0
    %994 = vrot.lane.b32.xlu0 %v136, 104
    %v995 = vpop.permute.xlu0 %994
    %996 = vrot.lane.b32.xlu0 %v136, 72
    %v997 = vpop.permute.xlu0 %996
    %v999 = vsel %vm139, %v995, 0
    %v1002 = vsel %vm139, %v997, 0
    %1004 = vmatprep.subr.bf16.mxu0 0
    %1005 = vmatpush1.bf16.xpose.msra.mxu0 0
    %1006 = vmatprep.subr.bf16.mxu0 0
    %1007 = vmatpush1.bf16.xpose.msra.mxu0 0
    %1008 = vmatprep.subr.bf16.mxu0 0
    %1009 = vmatpush1.bf16.xpose.msra.mxu0 0
    %1010 = vmatprep.subr.bf16.mxu0 0
    %1011 = vmatpush1.bf16.xpose.msra.mxu0 0
    %1012 = vmatprep.subr.bf16.mxu0 0
    %1013 = vmatpush1.bf16.xpose.msra.mxu0 0
    %1014 = vmatprep.subr.bf16.mxu0 0
    %1015 = vmatpush1.bf16.xpose.msra.mxu0 0
    %1016 = vmatprep.subr.bf16.mxu0 0
    %1017 = vmatpush1.bf16.xpose.msra.mxu0 0
    %1018 = vmatprep.subr.bf16.mxu0 0
    %1019 = vmatpush1.bf16.xpose.msra.mxu0 %v1002
    %1020 = vmatprep.subr.bf16.mxu0 0
    %1021 = vmatpush2.bf16.xpose.msra.mxu0 0
    %1022 = vmatprep.subr.bf16.mxu0 0
    %1023 = vmatpush2.bf16.xpose.msra.mxu0 0
    %1024 = vmatprep.subr.bf16.mxu0 0
    %1025 = vmatpush2.bf16.xpose.msra.mxu0 0
    %1026 = vmatprep.subr.bf16.mxu0 0
    %1027 = vmatpush2.bf16.xpose.msra.mxu0 0
    %1028 = vmatprep.subr.bf16.mxu0 0
    %1029 = vmatpush2.bf16.xpose.msra.mxu0 0
    %1030 = vmatprep.subr.bf16.mxu0 0
    %1031 = vmatpush2.bf16.xpose.msra.mxu0 0
    %1032 = vmatprep.subr.bf16.mxu0 0
    %1033 = vmatpush2.bf16.xpose.msra.mxu0 0
    %1034 = vmatprep.subr.bf16.mxu0 0
    %1035 = vmatpush2.bf16.xpose.msra.mxu0 0
    %1036 = vmatprep.mubr.bf16.mxu0 0
    %1037 = vmatmul.mubr.bf16.gmra.mxu0 %v999
    %v1038 = vpop.f32.mrf.mxu0
    %v1039 = vadd.f32 0.0, %v1038
    %v1040 = vpop.f32.mrf.mxu0
    %v1041 = vpop.f32.mrf.mxu0
    %v1042 = vpop.f32.mrf.mxu0
    %1043 = vdwg.mxu0
    %v1044 = vsel %vm139, %v989, -inf
    %1045 = vmax.xlane.f32.xlu0 %v1044
    %v1046 = vpop.xlane.xlu0 %1045
    %v1047 = vsel %vm139, %v1039, -inf
    %1048 = vmax.xlane.f32.xlu0 %v1047
    %v1049 = vpop.xlane.xlu0 %1048
    %v1050 = vsub.f32 %v989, %v1046
    %v1051 = vsub.f32 %v1039, %v1049
    %v1052 = vmul.f32 %v1050, 1.442695
    %v1053 = vpow.pop %v1052
    %v1054 = vmul.f32 %v1051, 1.442695
    %v1055 = vpow.pop %v1054
    %v1056 = vsel %vm139, %v1053, 0.0
    %1057 = vadd.xlane.f32.xlu0 %v1056
    %v1058 = vpop.xlane.xlu0 %1057
    %v1059 = vsel %vm139, %v1055, 0.0
    %1060 = vadd.xlane.f32.xlu0 %v1059
    %v1061 = vpop.xlane.xlu0 %1060
    %v1062 = vpack.c.bf16 %v1053, %v1053
    %v1063 = vpack.c.bf16 %v1055, %v1055
    %1064 = vrot.lane.b32.xlu0 %v135, 40
    %v1065 = vpop.permute.xlu0 %1064
    %v1067 = vsel %vm139, %v1062, 0
    %v1070 = vsel %vm259, %v1065, 0
    %1072 = vmatprep.subr.bf16.mxu0 0
    %1073 = vmatpush1.bf16.msra.mxu0 0
    %1074 = vmatprep.subr.bf16.mxu0 0
    %1075 = vmatpush1.bf16.msra.mxu0 0
    %1076 = vmatprep.subr.bf16.mxu0 0
    %1077 = vmatpush1.bf16.msra.mxu0 0
    %1078 = vmatprep.subr.bf16.mxu0 0
    %1079 = vmatpush1.bf16.msra.mxu0 0
    %1080 = vmatprep.subr.bf16.mxu0 0
    %1081 = vmatpush1.bf16.msra.mxu0 0
    %1082 = vmatprep.subr.bf16.mxu0 0
    %1083 = vmatpush1.bf16.msra.mxu0 0
    %1084 = vmatprep.subr.bf16.mxu0 0
    %1085 = vmatpush1.bf16.msra.mxu0 0
    %1086 = vmatprep.subr.bf16.mxu0 0
    %1087 = vmatpush1.bf16.msra.mxu0 %v1070
    %1088 = vmatprep.subr.bf16.mxu0 0
    %1089 = vmatpush2.bf16.msra.mxu0 0
    %1090 = vmatprep.subr.bf16.mxu0 0
    %1091 = vmatpush2.bf16.msra.mxu0 0
    %1092 = vmatprep.subr.bf16.mxu0 0
    %1093 = vmatpush2.bf16.msra.mxu0 0
    %1094 = vmatprep.subr.bf16.mxu0 0
    %1095 = vmatpush2.bf16.msra.mxu0 0
    %1096 = vmatprep.subr.bf16.mxu0 0
    %1097 = vmatpush2.bf16.msra.mxu0 0
    %1098 = vmatprep.subr.bf16.mxu0 0
    %1099 = vmatpush2.bf16.msra.mxu0 0
    %1100 = vmatprep.subr.bf16.mxu0 0
    %1101 = vmatpush2.bf16.msra.mxu0 0
    %1102 = vmatprep.subr.bf16.mxu0 0
    %1103 = vmatpush2.bf16.msra.mxu0 0
    %1104 = vmatprep.mubr.bf16.mxu0 0
    %1105 = vmatmul.mubr.bf16.gmra.mxu0 %v1067
    %v1106 = vpop.f32.mrf.mxu0
    %v1107 = vadd.f32 0.0, %v1106
    %v1108 = vpop.f32.mrf.mxu0
    %v1109 = vpop.f32.mrf.mxu0
    %v1110 = vpop.f32.mrf.mxu0
    %1111 = vdwg.mxu0
    %1112 = vrot.lane.b32.xlu0 %v136, 40
    %v1113 = vpop.permute.xlu0 %1112
    %v1115 = vsel %vm139, %v1063, 0
    %v1118 = vsel %vm259, %v1113, 0
    %1120 = vmatprep.subr.bf16.mxu0 0
    %1121 = vmatpush1.bf16.msra.mxu0 0
    %1122 = vmatprep.subr.bf16.mxu0 0
    %1123 = vmatpush1.bf16.msra.mxu0 0
    %1124 = vmatprep.subr.bf16.mxu0 0
    %1125 = vmatpush1.bf16.msra.mxu0 0
    %1126 = vmatprep.subr.bf16.mxu0 0
    %1127 = vmatpush1.bf16.msra.mxu0 0
    %1128 = vmatprep.subr.bf16.mxu0 0
    %1129 = vmatpush1.bf16.msra.mxu0 0
    %1130 = vmatprep.subr.bf16.mxu0 0
    %1131 = vmatpush1.bf16.msra.mxu0 0
    %1132 = vmatprep.subr.bf16.mxu0 0
    %1133 = vmatpush1.bf16.msra.mxu0 0
    %1134 = vmatprep.subr.bf16.mxu0 0
    %1135 = vmatpush1.bf16.msra.mxu0 %v1118
    %1136 = vmatprep.subr.bf16.mxu0 0
    %1137 = vmatpush2.bf16.msra.mxu0 0
    %1138 = vmatprep.subr.bf16.mxu0 0
    %1139 = vmatpush2.bf16.msra.mxu0 0
    %1140 = vmatprep.subr.bf16.mxu0 0
    %1141 = vmatpush2.bf16.msra.mxu0 0
    %1142 = vmatprep.subr.bf16.mxu0 0
    %1143 = vmatpush2.bf16.msra.mxu0 0
    %1144 = vmatprep.subr.bf16.mxu0 0
    %1145 = vmatpush2.bf16.msra.mxu0 0
    %1146 = vmatprep.subr.bf16.mxu0 0
    %1147 = vmatpush2.bf16.msra.mxu0 0
    %1148 = vmatprep.subr.bf16.mxu0 0
    %1149 = vmatpush2.bf16.msra.mxu0 0
    %1150 = vmatprep.subr.bf16.mxu0 0
    %1151 = vmatpush2.bf16.msra.mxu0 0
    %1152 = vmatprep.mubr.bf16.mxu0 0
    %1153 = vmatmul.mubr.bf16.gmra.mxu0 %v1115
    %v1154 = vpop.f32.mrf.mxu0
    %v1155 = vadd.f32 0.0, %v1154
    %v1156 = vpop.f32.mrf.mxu0
    %v1157 = vpop.f32.mrf.mxu0
    %v1158 = vpop.f32.mrf.mxu0
    %1159 = vdwg.mxu0
    %v1160 = vrcp.pop %v1058
    %v1161 = vrcp.pop %v1061
    %v1162 = vmul.f32 %v1107, %v1160
    %v1163 = vmul.f32 %v1155, %v1161
    %v1164 = vpack.c.bf16 %v1163, %v1162
    %v1165 = vld [vmem:[%s3 + $0xc] sm:$0xf]
    %v1167 = vsel %vm139, %v1164, 0
    %v1170 = vsel %vm259, %v1165, 0
    %1172 = vmatprep.subr.bf16.mxu0 0
    %1173 = vmatpush1.bf16.msra.mxu0 0
    %1174 = vmatprep.subr.bf16.mxu0 0
    %1175 = vmatpush1.bf16.msra.mxu0 0
    %1176 = vmatprep.subr.bf16.mxu0 0
    %1177 = vmatpush1.bf16.msra.mxu0 0
    %1178 = vmatprep.subr.bf16.mxu0 0
    %1179 = vmatpush1.bf16.msra.mxu0 0
    %1180 = vmatprep.subr.bf16.mxu0 0
    %1181 = vmatpush1.bf16.msra.mxu0 0
    %1182 = vmatprep.subr.bf16.mxu0 0
    %1183 = vmatpush1.bf16.msra.mxu0 0
    %1184 = vmatprep.subr.bf16.mxu0 0
    %1185 = vmatpush1.bf16.msra.mxu0 0
    %1186 = vmatprep.subr.bf16.mxu0 0
    %1187 = vmatpush1.bf16.msra.mxu0 %v1170
    %1188 = vmatprep.subr.bf16.mxu0 0
    %1189 = vmatpush2.bf16.msra.mxu0 0
    %1190 = vmatprep.subr.bf16.mxu0 0
    %1191 = vmatpush2.bf16.msra.mxu0 0
    %1192 = vmatprep.subr.bf16.mxu0 0
    %1193 = vmatpush2.bf16.msra.mxu0 0
    %1194 = vmatprep.subr.bf16.mxu0 0
    %1195 = vmatpush2.bf16.msra.mxu0 0
    %1196 = vmatprep.subr.bf16.mxu0 0
    %1197 = vmatpush2.bf16.msra.mxu0 0
    %1198 = vmatprep.subr.bf16.mxu0 0
    %1199 = vmatpush2.bf16.msra.mxu0 0
    %1200 = vmatprep.subr.bf16.mxu0 0
    %1201 = vmatpush2.bf16.msra.mxu0 0
    %1202 = vmatprep.subr.bf16.mxu0 0
    %1203 = vmatpush2.bf16.msra.mxu0 0
    %1204 = vmatprep.mubr.bf16.mxu0 0
    %1205 = vmatmul.mubr.bf16.gmra.mxu0 %v1167
    %v1206 = vpop.f32.mrf.mxu0
    %v1207 = vadd.f32 0.0, %v1206
    %v1208 = vpop.f32.mrf.mxu0
    %v1209 = vpop.f32.mrf.mxu0
    %v1210 = vadd.f32 0.0, %v1209
    %v1211 = vpop.f32.mrf.mxu0
    %1212 = vdwg.mxu0
    %v1213 = vadd.f32 %v942, %v1207
    %v1214 = vadd.f32 %v943, %v1210
    %v1215 = vld [vmem:[%s4] sm:$0x1]
    %v1217 = vlaneseq
    %v1218 = vshrl.u32 %v1217, 7
    %v1219 = vsub.s32 0, %v1218
    %v1220 = vrot.slane %v1215, %v1219
    %v1222 = vadd.f32 %v1213, %v1220
    %v1223 = vadd.f32 %v1214, %v1220
    %v1224 = vadd.f32 %v1222, %v60
    %v1225 = vadd.f32 %v1223, %v61
    %v1226 = vld [vmem:[%s9] sm:$0x1]
    %v1227 = vld [vmem:[%s10] sm:$0x1]
    %v1228 = vsel %vm86, %v1224, 0.0
    %1229 = vadd.xlane.f32.xlu0 %v1228
    %v1230 = vpop.xlane.xlu0 %1229
    %v1231 = vsel %vm86, %v1225, 0.0
    %1232 = vadd.xlane.f32.xlu0 %v1231
    %v1233 = vpop.xlane.xlu0 %1232
    %v1234 = vrcp.pop 32.0
    %v1235 = vmul.f32 %v1230, %v1234
    %v1236 = vmul.f32 %v1233, %v1234
    %v1237 = vsub.f32 %v1224, %v1235
    %v1238 = vsub.f32 %v1225, %v1236
    %v1239 = vmul.f32 %v1237, %v1237
    %v1240 = vmul.f32 %v1238, %v1238
    %v1241 = vsel %vm86, %v1239, 0.0
    %1242 = vadd.xlane.f32.xlu0 %v1241
    %v1243 = vpop.xlane.xlu0 %1242
    %v1244 = vsel %vm86, %v1240, 0.0
    %1245 = vadd.xlane.f32.xlu0 %v1244
    %v1246 = vpop.xlane.xlu0 %1245
    %v1247 = vmul.f32 %v1243, %v1234
    %v1248 = vmul.f32 %v1246, %v1234
    %v1249 = vadd.f32 %v1247, 1e-05
    %v1250 = vadd.f32 %v1248, 1e-05
    %v1251 = vrsqrt.pop %v1249
    %v1252 = vrsqrt.pop %v1250
    %v1253 = vmul.f32 %v1237, %v1251
    %v1254 = vmul.f32 %v1238, %v1252
    %v1256 = vlaneseq
    %v1257 = vshrl.u32 %v1256, 7
    %v1258 = vsub.s32 0, %v1257
    %v1259 = vrot.slane %v1226, %v1258
    %v1261 = vmul.f32 %v1253, %v1259
    %v1262 = vmul.f32 %v1254, %v1259
    %v1264 = vlaneseq
    %v1265 = vshrl.u32 %v1264, 7
    %v1266 = vsub.s32 0, %v1265
    %v1267 = vrot.slane %v1227, %v1266
    %v1269 = vadd.f32 %v1261, %v1267
    %v1270 = vadd.f32 %v1262, %v1267
    %v1271 = vpack.c.bf16 %v1270, %v1269
    %v1272 = vld [vmem:[#allocation2] sm:$0xf]
    %v1273 = vld [vmem:[#allocation2 + $0x4] sm:$0xf]
    %v1274 = vld [vmem:[#allocation2 + $0x8] sm:$0xf]
    %v1275 = vld [vmem:[#allocation2 + $0xc] sm:$0xf]
    %v1276 = vld [vmem:[%s6] sm:$0x1]
    %v1278 = vlaneseq
    %v1279 = vshrl.u32 %v1278, 7
    %v1280 = vsub.s32 0, %v1279
    %v1281 = vrot.slane %v1276, %v1280
    %v1287 = vunpack.c.l.b16 %v1272
    %v1288 = vunpack.c.l.b16 %v1273
    %v1289 = vunpack.c.l.b16 %v1274
    %v1290 = vunpack.c.l.b16 %v1275
    %v1291 = vpack.c.b16 %v1288, %v1287
    %v1292 = vpack.c.b16 %v1290, %v1289
    %v1296 = vsel %vm86, %v1271, 0
    %1298 = vmatprep.subr.bf16.mxu0 0
    %1299 = vmatpush1.bf16.msra.mxu0 0
    %1300 = vmatprep.subr.bf16.mxu0 0
    %1301 = vmatpush1.bf16.msra.mxu0 0
    %1302 = vmatprep.subr.bf16.mxu0 0
    %1303 = vmatpush1.bf16.msra.mxu0 0
    %1304 = vmatprep.subr.bf16.mxu0 0
    %1305 = vmatpush1.bf16.msra.mxu0 0
    %1306 = vmatprep.subr.bf16.mxu0 0
    %1307 = vmatpush1.bf16.msra.mxu0 0
    %1308 = vmatprep.subr.bf16.mxu0 0
    %1309 = vmatpush1.bf16.msra.mxu0 0
    %1310 = vmatprep.subr.bf16.mxu0 0
    %1311 = vmatpush1.bf16.msra.mxu0 %v1292
    %1312 = vmatprep.subr.bf16.mxu0 0
    %1313 = vmatpush1.bf16.msra.mxu0 %v1291
    %1314 = vmatprep.subr.bf16.mxu0 0
    %1315 = vmatpush2.bf16.msra.mxu0 0
    %1316 = vmatprep.subr.bf16.mxu0 0
    %1317 = vmatpush2.bf16.msra.mxu0 0
    %1318 = vmatprep.subr.bf16.mxu0 0
    %1319 = vmatpush2.bf16.msra.mxu0 0
    %1320 = vmatprep.subr.bf16.mxu0 0
    %1321 = vmatpush2.bf16.msra.mxu0 0
    %1322 = vmatprep.subr.bf16.mxu0 0
    %1323 = vmatpush2.bf16.msra.mxu0 0
    %1324 = vmatprep.subr.bf16.mxu0 0
    %1325 = vmatpush2.bf16.msra.mxu0 0
    %1326 = vmatprep.subr.bf16.mxu0 0
    %1327 = vmatpush2.bf16.msra.mxu0 0
    %1328 = vmatprep.subr.bf16.mxu0 0
    %1329 = vmatpush2.bf16.msra.mxu0 0
    %1330 = vmatprep.mubr.bf16.mxu0 0
    %1331 = vmatmul.mubr.bf16.gmra.mxu0 %v1296
    %v1332 = vpop.f32.mrf.mxu0
    %v1333 = vadd.f32 %v1281, %v1332
    %v1334 = vpop.f32.mrf.mxu0
    %v1335 = vpop.f32.mrf.mxu0
    %v1336 = vadd.f32 %v1281, %v1335
    %v1337 = vpop.f32.mrf.mxu0
    %1338 = vdwg.mxu0
    %v1339 = vmax.f32 %v1333, 0.0
    %v1340 = vmax.f32 %v1336, 0.0
    %v1341 = vpack.c.bf16 %v1340, %v1339
    %v1342 = vld [vmem:[%s7] sm:$0xf]
    %v1343 = vld [vmem:[%s7 + $0x4] sm:$0xf]
    %v1344 = vld [vmem:[%s7 + $0x8] sm:$0xf]
    %v1345 = vld [vmem:[%s7 + $0xc] sm:$0xf]
    %v1346 = vld [vmem:[%s7 + $0x10] sm:$0xf]
    %v1347 = vld [vmem:[%s7 + $0x14] sm:$0xf]
    %v1348 = vld [vmem:[%s7 + $0x18] sm:$0xf]
    %v1349 = vld [vmem:[%s7 + $0x1c] sm:$0xf]
    %v1350 = vld [vmem:[%s8] sm:$0x1]
    %v1352 = vlaneseq
    %v1353 = vshrl.u32 %v1352, 7
    %v1354 = vsub.s32 0, %v1353
    %v1355 = vrot.slane %v1350, %v1354
    %v1365 = vunpack.c.l.b16 %v1342
    %v1366 = vunpack.c.l.b16 %v1343
    %v1367 = vunpack.c.l.b16 %v1344
    %v1368 = vunpack.c.l.b16 %v1345
    %v1369 = vunpack.c.l.b16 %v1346
    %v1370 = vunpack.c.l.b16 %v1347
    %v1371 = vunpack.c.l.b16 %v1348
    %v1372 = vunpack.c.l.b16 %v1349
    %v1373 = vpack.c.b16 %v1366, %v1365
    %v1374 = vpack.c.b16 %v1368, %v1367
    %v1375 = vpack.c.b16 %v1370, %v1369
    %v1376 = vpack.c.b16 %v1372, %v1371
    %vm1381 = vcmask 523264
    %v1383 = vsel %vm1381, %v1341, 0
    %1385 = vmatprep.subr.bf16.mxu0 0
    %1386 = vmatpush1.bf16.msra.mxu0 0
    %1387 = vmatprep.subr.bf16.mxu0 0
    %1388 = vmatpush1.bf16.msra.mxu0 0
    %1389 = vmatprep.subr.bf16.mxu0 0
    %1390 = vmatpush1.bf16.msra.mxu0 0
    %1391 = vmatprep.subr.bf16.mxu0 0
    %1392 = vmatpush1.bf16.msra.mxu0 0
    %1393 = vmatprep.subr.bf16.mxu0 0
    %1394 = vmatpush1.bf16.msra.mxu0 %v1376
    %1395 = vmatprep.subr.bf16.mxu0 0
    %1396 = vmatpush1.bf16.msra.mxu0 %v1375
    %1397 = vmatprep.subr.bf16.mxu0 0
    %1398 = vmatpush1.bf16.msra.mxu0 %v1374
    %1399 = vmatprep.subr.bf16.mxu0 0
    %1400 = vmatpush1.bf16.msra.mxu0 %v1373
    %1401 = vmatprep.subr.bf16.mxu0 0
    %1402 = vmatpush2.bf16.msra.mxu0 0
    %1403 = vmatprep.subr.bf16.mxu0 0
    %1404 = vmatpush2.bf16.msra.mxu0 0
    %1405 = vmatprep.subr.bf16.mxu0 0
    %1406 = vmatpush2.bf16.msra.mxu0 0
    %1407 = vmatprep.subr.bf16.mxu0 0
    %1408 = vmatpush2.bf16.msra.mxu0 0
    %1409 = vmatprep.subr.bf16.mxu0 0
    %1410 = vmatpush2.bf16.msra.mxu0 0
    %1411 = vmatprep.subr.bf16.mxu0 0
    %1412 = vmatpush2.bf16.msra.mxu0 0
    %1413 = vmatprep.subr.bf16.mxu0 0
    %1414 = vmatpush2.bf16.msra.mxu0 0
    %1415 = vmatprep.subr.bf16.mxu0 0
    %1416 = vmatpush2.bf16.msra.mxu0 0
    %1417 = vmatprep.mubr.bf16.mxu0 0
    %1418 = vmatmul.mubr.bf16.gmra.mxu0 %v1383
    %v1419 = vpop.f32.mrf.mxu0
    %v1420 = vadd.f32 %v1355, %v1419
    %v1421 = vpop.f32.mrf.mxu0
    %v1422 = vpop.f32.mrf.mxu0
    %v1423 = vadd.f32 %v1355, %v1422
    %v1424 = vpop.f32.mrf.mxu0
    %1425 = vdwg.mxu0
    %v1426 = vadd.f32 %v1420, %v1269
    %v1427 = vadd.f32 %v1423, %v1270
    %v1428 = vld [vmem:[%s11] sm:$0x1]
    %v1429 = vld [vmem:[%s12] sm:$0x1]
    %v1430 = vsel %vm86, %v1426, 0.0
    %1431 = vadd.xlane.f32.xlu0 %v1430
    %v1432 = vpop.xlane.xlu0 %1431
    %v1433 = vsel %vm86, %v1427, 0.0
    %1434 = vadd.xlane.f32.xlu0 %v1433
    %v1435 = vpop.xlane.xlu0 %1434
    %v1436 = vmul.f32 %v1432, %v1234
    %v1437 = vmul.f32 %v1435, %v1234
    %v1438 = vsub.f32 %v1426, %v1436
    %v1439 = vsub.f32 %v1427, %v1437
    %v1440 = vmul.f32 %v1438, %v1438
    %v1441 = vmul.f32 %v1439, %v1439
    %v1442 = vsel %vm86, %v1440, 0.0
    %1443 = vadd.xlane.f32.xlu0 %v1442
    %v1444 = vpop.xlane.xlu0 %1443
    %v1445 = vsel %vm86, %v1441, 0.0
    %1446 = vadd.xlane.f32.xlu0 %v1445
    %v1447 = vpop.xlane.xlu0 %1446
    %v1448 = vmul.f32 %v1444, %v1234
    %v1449 = vmul.f32 %v1447, %v1234
    %v1450 = vadd.f32 %v1448, 1e-05
    %v1451 = vadd.f32 %v1449, 1e-05
    %v1452 = vrsqrt.pop %v1450
    %v1453 = vrsqrt.pop %v1451
    %v1454 = vmul.f32 %v1438, %v1452
    %v1455 = vmul.f32 %v1439, %v1453
    %v1457 = vlaneseq
    %v1458 = vshrl.u32 %v1457, 7
    %v1459 = vsub.s32 0, %v1458
    %v1460 = vrot.slane %v1428, %v1459
    %v1462 = vmul.f32 %v1454, %v1460
    %v1463 = vmul.f32 %v1455, %v1460
    %v1465 = vlaneseq
    %v1466 = vshrl.u32 %v1465, 7
    %v1467 = vsub.s32 0, %v1466
    %v1468 = vrot.slane %v1429, %v1467
    %v1470 = vadd.f32 %v1462, %v1468
    %v1471 = vadd.f32 %v1463, %v1468
    %1472 = vst.msk [vmem:[#allocation5] sm:$0xff] %vm86, %v1470
    %1473 = vst.msk [vmem:[#allocation5 + $0x8] sm:$0xff] %vm86, %v1471
    // Predicated region
    $region58: #{tpu_custom_call.1} parent=1 // pred_check
      _
    $region59: #{tpu_custom_call.1} parent=1 // pred_check_branch
      %1475 = sbr.rel (0) target = $region61
    $region60: #{tpu_custom_call.1} parent=1 // pred_region
      %s1477 = ssub.s32 256, 256
      %1478 = vsyncadd [#allocation4], %s1477
      %s1479 = sshll.u32 [#allocation5], 4
      %s1480 = int_to_ptr.vmem [resolvable:$true] %s1479
      %1485 = dma.vmem_to_hbm [thread:$0]  %s1480, 256, %s13, [#allocation4], 128, 128, 8
    $region61: #{tpu_custom_call.1} parent=1 // pred_fallthru
      _
    // Predicated region
    $region62: #{tpu_custom_call.1} parent=1 // pred_check
      _
    $region63: #{tpu_custom_call.1} parent=1 // pred_check_branch
      %1487 = sbr.rel (0) target = $region65
    $region64: #{tpu_custom_call.1} parent=1 // pred_region
      %1488 = dma.done [#allocation4], 256
    $region65: #{tpu_custom_call.1} parent=1 // pred_fallthru
      _
    %1489 = vsyncpa [#allocation3], 1
    %1490 = vsyncpa [#allocation4], 1

</llo_original>
